<compile_context>
chip_gen: v7x
topology: tpu7x:2x2x1
jax: 0.10.0
libtpu: 0.0.40
codegen_flags: <defaults>
</compile_context>

<pallas_src>
import math

import jax
import jax.numpy as jnp
from jax.experimental import pallas as pl
from jax.experimental.pallas import tpu as pltpu

EMBEDDING_SIZE = (4, 4, 4)
FLAT = EMBEDDING_SIZE[0] * EMBEDDING_SIZE[1] * EMBEDDING_SIZE[2] + 3  # 67
NEURONS = 256
LANE = 128  # lane-padded feature / output width


def _round_up(n, m):
    return ((n + m - 1) // m) * m


# ----------------------------- Pallas kernel --------------------------------

def piecenet_kernel(x_ref, wa_ref, wb_ref, wc_ref, ba_ref, bb_ref, bc_ref, o_ref):
    """Whole PieceNet MLP stack (3 FullyConnected blocks + outer ReLUs).

    x_ref : (TB, 128) f32   — lane-padded features (67 real cols)
    wa_ref: (3*128, 256) bf16   first Linear of each block (in rows padded 67->128)
    wb_ref: (3*256, 256) bf16   second Linear of each block
    wc_ref: (3*256, 128) bf16   third Linear of each block (out cols padded ->128)
    ba/bb : (3, 256) f32, bc: (3, 128) f32   biases (padded cols are 0)
    o_ref : (TB, 128) f32   — lane-padded output (real cols sliced off outside)
    """
    h = x_ref[...]  # (TB, 128) f32
    for blk in range(3):  # static unroll — 3 FullyConnected blocks
        wa = wa_ref[pl.ds(blk * LANE, LANE), :]          # (128, 256) bf16
        wb = wb_ref[pl.ds(blk * NEURONS, NEURONS), :]    # (256, 256) bf16
        wc = wc_ref[pl.ds(blk * NEURONS, NEURONS), :]    # (256, 128) bf16
        ba = ba_ref[pl.ds(blk, 1), :]                    # (1, 256) f32
        bb = bb_ref[pl.ds(blk, 1), :]                    # (1, 256) f32
        bc = bc_ref[pl.ds(blk, 1), :]                    # (1, 128) f32

        # Linear + ReLU (+ Dropout=identity)
        h = jnp.maximum(
            jnp.dot(h.astype(jnp.bfloat16), wa,
                    preferred_element_type=jnp.float32) + ba, 0.0)
        # Linear + ReLU (+ Dropout=identity)
        h = jnp.maximum(
            jnp.dot(h.astype(jnp.bfloat16), wb,
                    preferred_element_type=jnp.float32) + bb, 0.0)
        # Linear, then the outer relu1/relu2/relu3 of PieceNet.forward
        h = jnp.dot(h.astype(jnp.bfloat16), wc,
                    preferred_element_type=jnp.float32) + bc
        h = jnp.maximum(h, 0.0)

    o_ref[...] = h.astype(o_ref.dtype)


def piecenet_pallas(x_padded, wa, wb, wc, ba, bb, bc, *, tb=256):
    """x_padded: (B, 128) f32. Returns (B, 128) f32 (lane-padded output)."""
    B = x_padded.shape[0]
    tb = min(tb, _round_up(B, 8))          # small-B: one full (sublane-aligned) tile
    Bp = _round_up(B, tb)
    if Bp != B:
        x_padded = jnp.pad(x_padded, ((0, Bp - B), (0, 0)))
    nb = Bp // tb

    out = pl.pallas_call(
        piecenet_kernel,
        out_shape=jax.ShapeDtypeStruct((Bp, LANE), jnp.float32),
        grid_spec=pltpu.PrefetchScalarGridSpec(
            num_scalar_prefetch=0,
            grid=(nb,),
            in_specs=[
                pl.BlockSpec((tb, LANE), lambda i: (i, 0)),     # x tile, pipelined
                pl.BlockSpec(wa.shape, lambda i: (0, 0)),       # weights: VMEM-resident
                pl.BlockSpec(wb.shape, lambda i: (0, 0)),
                pl.BlockSpec(wc.shape, lambda i: (0, 0)),
                pl.BlockSpec(ba.shape, lambda i: (0, 0)),
                pl.BlockSpec(bb.shape, lambda i: (0, 0)),
                pl.BlockSpec(bc.shape, lambda i: (0, 0)),
            ],
            out_specs=pl.BlockSpec((tb, LANE), lambda i: (i, 0)),
        ),
        compiler_params=pltpu.CompilerParams(
            dimension_semantics=("parallel",)),                 # megacore-friendly
    )(x_padded, wa, wb, wc, ba, bb, bc)
    return out[:B]


# ------------------------------ JAX glue -------------------------------------

def embed_and_flatten_padded(piece, location):
    """PieceNet.embed + view + cat, plus zero-pad of the 67 features to 128."""
    B, C = piece.shape[0], piece.shape[1]
    emb = jnp.zeros((B, C) + EMBEDDING_SIZE, jnp.float32)
    d0, d1, d2 = piece.shape[2:5]
    emb = emb.at[:, :, :d0, :d1, :d2].set(piece.astype(jnp.float32))
    x = emb.reshape(B, -1)                                   # (B, 64)
    loc = location.reshape(B, -1).astype(jnp.float32)        # (B, 3)
    x = jnp.concatenate([x, loc], axis=1)                    # (B, 67)
    return jnp.pad(x, ((0, 0), (0, LANE - x.shape[1])))      # (B, 128)


def init_linear(key, fan_in, fan_out):
    """Deterministic PyTorch-style Linear init; weight stored as (in, out)."""
    bound = 1.0 / math.sqrt(fan_in)
    wk, bk = jax.random.split(key)
    w = jax.random.uniform(wk, (fan_in, fan_out), jnp.float32, -bound, bound)
    b = jax.random.uniform(bk, (1, fan_out), jnp.float32, -bound, bound)
    return w, b


def init_piecenet_params(key, out_dim):
    dims = [
        (FLAT, NEURONS), (NEURONS, NEURONS), (NEURONS, FLAT),      # fc1 block
        (FLAT, NEURONS), (NEURONS, NEURONS), (NEURONS, FLAT),      # fc2 block
        (FLAT, NEURONS), (NEURONS, NEURONS), (NEURONS, out_dim),   # fc3 block
    ]
    keys = jax.random.split(key, len(dims))
    return [init_linear(k, fi, fo) for k, (fi, fo) in zip(keys, dims)]


def pack_params(params):
    """Pack 9 (W, b) pairs into 6 lane-padded slabs; weights in bf16."""
    wa_l, wb_l, wc_l, ba_l, bb_l, bc_l = [], [], [], [], [], []
    for blk in range(3):
        (wA, bA), (wB, bB), (wC, bC) = params[3 * blk: 3 * blk + 3]
        wa_l.append(jnp.pad(wA, ((0, LANE - wA.shape[0]), (0, 0))))        # (128,256)
        wb_l.append(wB)                                                    # (256,256)
        wc_l.append(jnp.pad(wC, ((0, 0), (0, LANE - wC.shape[1]))))        # (256,128)
        ba_l.append(bA.reshape(1, -1))
        bb_l.append(bB.reshape(1, -1))
        bc_l.append(jnp.pad(bC.reshape(1, -1), ((0, 0), (0, LANE - bC.shape[1]))))
    wa = jnp.concatenate(wa_l, axis=0).astype(jnp.bfloat16)   # (384, 256)
    wb = jnp.concatenate(wb_l, axis=0).astype(jnp.bfloat16)   # (768, 256)
    wc = jnp.concatenate(wc_l, axis=0).astype(jnp.bfloat16)   # (768, 128)
    ba = jnp.concatenate(ba_l, axis=0)                        # (3, 256) f32
    bb = jnp.concatenate(bb_l, axis=0)                        # (3, 256) f32
    bc = jnp.concatenate(bc_l, axis=0)                        # (3, 128) f32
    return wa, wb, wc, ba, bb, bc


def piecenet_forward(piece, location, params, out_dim, *, tb=256):
    x = embed_and_flatten_padded(piece, location)              # (B, 128)
    packed = pack_params(params)
    y = piecenet_pallas(x, *packed, tb=tb)                     # (B, 128)
    return y[:, :out_dim]


# Pure-JAX reference using the same bf16-dot / f32-accumulate numerics.
def piecenet_reference(piece, location, params, out_dim):
    B = piece.shape[0]
    emb = jnp.zeros((B, piece.shape[1]) + EMBEDDING_SIZE, jnp.float32)
    d0, d1, d2 = piece.shape[2:5]
    emb = emb.at[:, :, :d0, :d1, :d2].set(piece.astype(jnp.float32))
    x = jnp.concatenate(
        [emb.reshape(B, -1), location.reshape(B, -1).astype(jnp.float32)], axis=1)

    def bdot(a, w):
        return jnp.dot(a.astype(jnp.bfloat16), w.astype(jnp.bfloat16),
                       preferred_element_type=jnp.float32)

    def fc(x, p3):
        (wA, bA), (wB, bB), (wC, bC) = p3
        h = jnp.maximum(bdot(x, wA) + bA, 0.0)
        h = jnp.maximum(bdot(h, wB) + bB, 0.0)
        return bdot(h, wC) + bC

    h = jnp.maximum(fc(x, params[0:3]), 0.0)
    h = jnp.maximum(fc(h, params[3:6]), 0.0)
    h = jnp.maximum(fc(h, params[6:9]), 0.0)
    return h


# --------------------------------- main --------------------------------------

if __name__ == "__main__":
    out_dim = 8
    B = 2

    key = jax.random.PRNGKey(0)
    k_piece, k_loc, k_params = jax.random.split(key, 3)

    # piece: (B, 1, 4, 4, 4)  (already full embedding size -> embed zero-pads/no-ops)
    piece = jax.random.normal(k_piece, (B, 1, 4, 4, 4), jnp.float32)
    # location: (B, 3)
    location = jax.random.normal(k_loc, (B, 3), jnp.float32)

    params = init_piecenet_params(k_params, out_dim)

    out = piecenet_forward(piece, location, params, out_dim)
    out = jax.block_until_ready(out)

    ref = jax.block_until_ready(piecenet_reference(piece, location, params, out_dim))
    assert out.shape == (B, out_dim), out.shape
    assert jnp.allclose(out, ref, atol=1e-2, rtol=1e-2), "mismatch vs reference"

    print("KERNEL_OK")
</pallas_src>

<mosaic_0001>
module attributes {stable_mosaic.version = 11 : i64} {
  func.func @piecenet_kernel(%arg0: i32, %arg1: memref<8x128xf32, #tpu.memory_space<vmem>>, %arg2: memref<384x256xbf16, #tpu.memory_space<vmem>>, %arg3: memref<768x256xbf16, #tpu.memory_space<vmem>>, %arg4: memref<768x128xbf16, #tpu.memory_space<vmem>>, %arg5: memref<3x256xf32, #tpu.memory_space<vmem>>, %arg6: memref<3x256xf32, #tpu.memory_space<vmem>>, %arg7: memref<3x128xf32, #tpu.memory_space<vmem>>, %arg8: memref<8x128xf32, #tpu.memory_space<vmem>>) attributes {dimension_semantics = [#tpu.dimension_semantics<parallel>], iteration_bounds = array<i64: 1>, scalar_prefetch = 0 : i64, scratch_operands = 0 : i64, tpu.core_type = #tpu.core_type<tc>, window_params = [{transform_indices = @transform_0, window_bounds = array<i64: 8, 128>}, {pipeline_mode = #tpu.pipeline_mode<synchronous>, transform_indices = @transform_1, window_bounds = array<i64: 384, 256>}, {pipeline_mode = #tpu.pipeline_mode<synchronous>, transform_indices = @transform_2, window_bounds = array<i64: 768, 256>}, {pipeline_mode = #tpu.pipeline_mode<synchronous>, transform_indices = @transform_3, window_bounds = array<i64: 768, 128>}, {pipeline_mode = #tpu.pipeline_mode<synchronous>, transform_indices = @transform_4, window_bounds = array<i64: 3, 256>}, {pipeline_mode = #tpu.pipeline_mode<synchronous>, transform_indices = @transform_5, window_bounds = array<i64: 3, 256>}, {pipeline_mode = #tpu.pipeline_mode<synchronous>, transform_indices = @transform_6, window_bounds = array<i64: 3, 128>}, {transform_indices = @transform_7, window_bounds = array<i64: 8, 128>}]} {
    %c0 = arith.constant 0 : index
    %c0_0 = arith.constant 0 : index
    %0 = vector.load %arg1[%c0, %c0_0] : memref<8x128xf32, #tpu.memory_space<vmem>>, vector<8x128xf32>
    %c0_1 = arith.constant 0 : index
    %c0_2 = arith.constant 0 : index
    %1 = vector.load %arg2[%c0_1, %c0_2] : memref<384x256xbf16, #tpu.memory_space<vmem>>, vector<128x256xbf16>
    %c0_3 = arith.constant 0 : index
    %c0_4 = arith.constant 0 : index
    %2 = vector.load %arg3[%c0_3, %c0_4] : memref<768x256xbf16, #tpu.memory_space<vmem>>, vector<256x256xbf16>
    %c0_5 = arith.constant 0 : index
    %c0_6 = arith.constant 0 : index
    %3 = vector.load %arg4[%c0_5, %c0_6] : memref<768x128xbf16, #tpu.memory_space<vmem>>, vector<256x128xbf16>
    %c0_7 = arith.constant 0 : index
    %c0_8 = arith.constant 0 : index
    %4 = vector.load %arg5[%c0_7, %c0_8] : memref<3x256xf32, #tpu.memory_space<vmem>>, vector<1x256xf32>
    %c0_9 = arith.constant 0 : index
    %c0_10 = arith.constant 0 : index
    %5 = vector.load %arg6[%c0_9, %c0_10] : memref<3x256xf32, #tpu.memory_space<vmem>>, vector<1x256xf32>
    %c0_11 = arith.constant 0 : index
    %c0_12 = arith.constant 0 : index
    %6 = vector.load %arg7[%c0_11, %c0_12] : memref<3x128xf32, #tpu.memory_space<vmem>>, vector<1x128xf32>
    %7 = arith.truncf %0 : vector<8x128xf32> to vector<8x128xbf16>
    %cst = arith.constant dense<0.000000e+00> : vector<8x256xf32>
    %8 = tpu.matmul %7, %1, %cst {dimension_numbers = #tpu.dot_dimension_numbers<[1], [0], [0], [1], [0, 0, 1, 1], [], []>} : vector<8x128xbf16>, vector<128x256xbf16>, vector<8x256xf32> -> vector<8x256xf32>
    %9 = vector.broadcast %4 : vector<1x256xf32> to vector<8x256xf32>
    %10 = arith.addf %8, %9 : vector<8x256xf32>
    %cst_13 = arith.constant 0.000000e+00 : f32
    %11 = vector.broadcast %cst_13 : f32 to vector<8x256xf32>
    %12 = arith.maximumf %10, %11 : vector<8x256xf32>
    %13 = arith.truncf %12 : vector<8x256xf32> to vector<8x256xbf16>
    %cst_14 = arith.constant dense<0.000000e+00> : vector<8x256xf32>
    %14 = tpu.matmul %13, %2, %cst_14 {dimension_numbers = #tpu.dot_dimension_numbers<[1], [0], [0], [1], [0, 0, 1, 1], [], []>} : vector<8x256xbf16>, vector<256x256xbf16>, vector<8x256xf32> -> vector<8x256xf32>
    %15 = vector.broadcast %5 : vector<1x256xf32> to vector<8x256xf32>
    %16 = arith.addf %14, %15 : vector<8x256xf32>
    %cst_15 = arith.constant 0.000000e+00 : f32
    %17 = vector.broadcast %cst_15 : f32 to vector<8x256xf32>
    %18 = arith.maximumf %16, %17 : vector<8x256xf32>
    %19 = arith.truncf %18 : vector<8x256xf32> to vector<8x256xbf16>
    %cst_16 = arith.constant dense<0.000000e+00> : vector<8x128xf32>
    %20 = tpu.matmul %19, %3, %cst_16 {dimension_numbers = #tpu.dot_dimension_numbers<[1], [0], [0], [1], [0, 0, 1, 1], [], []>} : vector<8x256xbf16>, vector<256x128xbf16>, vector<8x128xf32> -> vector<8x128xf32>
    %21 = vector.broadcast %6 : vector<1x128xf32> to vector<8x128xf32>
    %22 = arith.addf %20, %21 : vector<8x128xf32>
    %cst_17 = arith.constant 0.000000e+00 : f32
    %23 = vector.broadcast %cst_17 : f32 to vector<8x128xf32>
    %24 = arith.maximumf %22, %23 : vector<8x128xf32>
    %c128 = arith.constant 128 : index
    %c0_18 = arith.constant 0 : index
    %25 = vector.load %arg2[%c128, %c0_18] : memref<384x256xbf16, #tpu.memory_space<vmem>>, vector<128x256xbf16>
    %c256 = arith.constant 256 : index
    %c0_19 = arith.constant 0 : index
    %26 = vector.load %arg3[%c256, %c0_19] : memref<768x256xbf16, #tpu.memory_space<vmem>>, vector<256x256xbf16>
    %c256_20 = arith.constant 256 : index
    %c0_21 = arith.constant 0 : index
    %27 = vector.load %arg4[%c256_20, %c0_21] : memref<768x128xbf16, #tpu.memory_space<vmem>>, vector<256x128xbf16>
    %c1 = arith.constant 1 : index
    %c0_22 = arith.constant 0 : index
    %28 = vector.load %arg5[%c1, %c0_22] : memref<3x256xf32, #tpu.memory_space<vmem>>, vector<1x256xf32>
    %c1_23 = arith.constant 1 : index
    %c0_24 = arith.constant 0 : index
    %29 = vector.load %arg6[%c1_23, %c0_24] : memref<3x256xf32, #tpu.memory_space<vmem>>, vector<1x256xf32>
    %c1_25 = arith.constant 1 : index
    %c0_26 = arith.constant 0 : index
    %30 = vector.load %arg7[%c1_25, %c0_26] : memref<3x128xf32, #tpu.memory_space<vmem>>, vector<1x128xf32>
    %31 = arith.truncf %24 : vector<8x128xf32> to vector<8x128xbf16>
    %cst_27 = arith.constant dense<0.000000e+00> : vector<8x256xf32>
    %32 = tpu.matmul %31, %25, %cst_27 {dimension_numbers = #tpu.dot_dimension_numbers<[1], [0], [0], [1], [0, 0, 1, 1], [], []>} : vector<8x128xbf16>, vector<128x256xbf16>, vector<8x256xf32> -> vector<8x256xf32>
    %33 = vector.broadcast %28 : vector<1x256xf32> to vector<8x256xf32>
    %34 = arith.addf %32, %33 : vector<8x256xf32>
    %cst_28 = arith.constant 0.000000e+00 : f32
    %35 = vector.broadcast %cst_28 : f32 to vector<8x256xf32>
    %36 = arith.maximumf %34, %35 : vector<8x256xf32>
    %37 = arith.truncf %36 : vector<8x256xf32> to vector<8x256xbf16>
    %cst_29 = arith.constant dense<0.000000e+00> : vector<8x256xf32>
    %38 = tpu.matmul %37, %26, %cst_29 {dimension_numbers = #tpu.dot_dimension_numbers<[1], [0], [0], [1], [0, 0, 1, 1], [], []>} : vector<8x256xbf16>, vector<256x256xbf16>, vector<8x256xf32> -> vector<8x256xf32>
    %39 = vector.broadcast %29 : vector<1x256xf32> to vector<8x256xf32>
    %40 = arith.addf %38, %39 : vector<8x256xf32>
    %cst_30 = arith.constant 0.000000e+00 : f32
    %41 = vector.broadcast %cst_30 : f32 to vector<8x256xf32>
    %42 = arith.maximumf %40, %41 : vector<8x256xf32>
    %43 = arith.truncf %42 : vector<8x256xf32> to vector<8x256xbf16>
    %cst_31 = arith.constant dense<0.000000e+00> : vector<8x128xf32>
    %44 = tpu.matmul %43, %27, %cst_31 {dimension_numbers = #tpu.dot_dimension_numbers<[1], [0], [0], [1], [0, 0, 1, 1], [], []>} : vector<8x256xbf16>, vector<256x128xbf16>, vector<8x128xf32> -> vector<8x128xf32>
    %45 = vector.broadcast %30 : vector<1x128xf32> to vector<8x128xf32>
    %46 = arith.addf %44, %45 : vector<8x128xf32>
    %cst_32 = arith.constant 0.000000e+00 : f32
    %47 = vector.broadcast %cst_32 : f32 to vector<8x128xf32>
    %48 = arith.maximumf %46, %47 : vector<8x128xf32>
    %c256_33 = arith.constant 256 : index
    %c0_34 = arith.constant 0 : index
    %49 = vector.load %arg2[%c256_33, %c0_34] : memref<384x256xbf16, #tpu.memory_space<vmem>>, vector<128x256xbf16>
    %c512 = arith.constant 512 : index
    %c0_35 = arith.constant 0 : index
    %50 = vector.load %arg3[%c512, %c0_35] : memref<768x256xbf16, #tpu.memory_space<vmem>>, vector<256x256xbf16>
    %c512_36 = arith.constant 512 : index
    %c0_37 = arith.constant 0 : index
    %51 = vector.load %arg4[%c512_36, %c0_37] : memref<768x128xbf16, #tpu.memory_space<vmem>>, vector<256x128xbf16>
    %c2 = arith.constant 2 : index
    %c0_38 = arith.constant 0 : index
    %52 = vector.load %arg5[%c2, %c0_38] : memref<3x256xf32, #tpu.memory_space<vmem>>, vector<1x256xf32>
    %c2_39 = arith.constant 2 : index
    %c0_40 = arith.constant 0 : index
    %53 = vector.load %arg6[%c2_39, %c0_40] : memref<3x256xf32, #tpu.memory_space<vmem>>, vector<1x256xf32>
    %c2_41 = arith.constant 2 : index
    %c0_42 = arith.constant 0 : index
    %54 = vector.load %arg7[%c2_41, %c0_42] : memref<3x128xf32, #tpu.memory_space<vmem>>, vector<1x128xf32>
    %55 = arith.truncf %48 : vector<8x128xf32> to vector<8x128xbf16>
    %cst_43 = arith.constant dense<0.000000e+00> : vector<8x256xf32>
    %56 = tpu.matmul %55, %49, %cst_43 {dimension_numbers = #tpu.dot_dimension_numbers<[1], [0], [0], [1], [0, 0, 1, 1], [], []>} : vector<8x128xbf16>, vector<128x256xbf16>, vector<8x256xf32> -> vector<8x256xf32>
    %57 = vector.broadcast %52 : vector<1x256xf32> to vector<8x256xf32>
    %58 = arith.addf %56, %57 : vector<8x256xf32>
    %cst_44 = arith.constant 0.000000e+00 : f32
    %59 = vector.broadcast %cst_44 : f32 to vector<8x256xf32>
    %60 = arith.maximumf %58, %59 : vector<8x256xf32>
    %61 = arith.truncf %60 : vector<8x256xf32> to vector<8x256xbf16>
    %cst_45 = arith.constant dense<0.000000e+00> : vector<8x256xf32>
    %62 = tpu.matmul %61, %50, %cst_45 {dimension_numbers = #tpu.dot_dimension_numbers<[1], [0], [0], [1], [0, 0, 1, 1], [], []>} : vector<8x256xbf16>, vector<256x256xbf16>, vector<8x256xf32> -> vector<8x256xf32>
    %63 = vector.broadcast %53 : vector<1x256xf32> to vector<8x256xf32>
    %64 = arith.addf %62, %63 : vector<8x256xf32>
    %cst_46 = arith.constant 0.000000e+00 : f32
    %65 = vector.broadcast %cst_46 : f32 to vector<8x256xf32>
    %66 = arith.maximumf %64, %65 : vector<8x256xf32>
    %67 = arith.truncf %66 : vector<8x256xf32> to vector<8x256xbf16>
    %cst_47 = arith.constant dense<0.000000e+00> : vector<8x128xf32>
    %68 = tpu.matmul %67, %51, %cst_47 {dimension_numbers = #tpu.dot_dimension_numbers<[1], [0], [0], [1], [0, 0, 1, 1], [], []>} : vector<8x256xbf16>, vector<256x128xbf16>, vector<8x128xf32> -> vector<8x128xf32>
    %69 = vector.broadcast %54 : vector<1x128xf32> to vector<8x128xf32>
    %70 = arith.addf %68, %69 : vector<8x128xf32>
    %cst_48 = arith.constant 0.000000e+00 : f32
    %71 = vector.broadcast %cst_48 : f32 to vector<8x128xf32>
    %72 = arith.maximumf %70, %71 : vector<8x128xf32>
    %c0_49 = arith.constant 0 : index
    %c0_50 = arith.constant 0 : index
    %73 = vector.load %arg8[%c0_49, %c0_50] : memref<8x128xf32, #tpu.memory_space<vmem>>, vector<8x128xf32>
    tpu.vector_store %arg8[%c0_49, %c0_50], %72 {strides = array<i32>} : memref<8x128xf32, #tpu.memory_space<vmem>>, vector<8x128xf32>,
    return
  }
  func.func @transform_0(%arg0: i32) -> (i32, i32) {
    %c0_i32 = arith.constant 0 : i32
    %c0_i32_0 = arith.constant 0 : i32
    return %arg0, %c0_i32 : i32, i32
  }
  func.func @transform_1(%arg0: i32) -> (i32, i32) {
    %c0_i32 = arith.constant 0 : i32
    %c0_i32_0 = arith.constant 0 : i32
    %c0_i32_1 = arith.constant 0 : i32
    return %c0_i32, %c0_i32_0 : i32, i32
  }
  func.func @transform_2(%arg0: i32) -> (i32, i32) {
    %c0_i32 = arith.constant 0 : i32
    %c0_i32_0 = arith.constant 0 : i32
    %c0_i32_1 = arith.constant 0 : i32
    return %c0_i32, %c0_i32_0 : i32, i32
  }
  func.func @transform_3(%arg0: i32) -> (i32, i32) {
    %c0_i32 = arith.constant 0 : i32
    %c0_i32_0 = arith.constant 0 : i32
    %c0_i32_1 = arith.constant 0 : i32
    return %c0_i32, %c0_i32_0 : i32, i32
  }
  func.func @transform_4(%arg0: i32) -> (i32, i32) {
    %c0_i32 = arith.constant 0 : i32
    %c0_i32_0 = arith.constant 0 : i32
    %c0_i32_1 = arith.constant 0 : i32
    return %c0_i32, %c0_i32_0 : i32, i32
  }
  func.func @transform_5(%arg0: i32) -> (i32, i32) {
    %c0_i32 = arith.constant 0 : i32
    %c0_i32_0 = arith.constant 0 : i32
    %c0_i32_1 = arith.constant 0 : i32
    return %c0_i32, %c0_i32_0 : i32, i32
  }
  func.func @transform_6(%arg0: i32) -> (i32, i32) {
    %c0_i32 = arith.constant 0 : i32
    %c0_i32_0 = arith.constant 0 : i32
    %c0_i32_1 = arith.constant 0 : i32
    return %c0_i32, %c0_i32_0 : i32, i32
  }
  func.func @transform_7(%arg0: i32) -> (i32, i32) {
    %c0_i32 = arith.constant 0 : i32
    %c0_i32_0 = arith.constant 0 : i32
    return %arg0, %c0_i32 : i32, i32
  }
}

</mosaic_0001>

<llo_original>
// kernel: tpu_custom_call.1
$region0: #{tpu_custom_call.1}
  #allocation0 [shape = 'u32[]', space=smem, size = 0x4, offset = 0x4, fixed_abs, tag = 'smem constant byte address 0x4 - core index']
  #allocation1 [shape = 'u32[144,128]{1,0:T(1,128)}', space=vmem, size = 0x12000, scoped, tag = 'internal scratch']
  %s0 = inlined_call_operand.hbm [shape: f32[8,128], index: 0, kind: input, shape index: {}]
  %s1 = inlined_call_operand.hbm [shape: bf16[384,256], index: 1, kind: input, shape index: {}]
  %s2 = inlined_call_operand.hbm [shape: bf16[768,256], index: 2, kind: input, shape index: {}]
  %s3 = inlined_call_operand.hbm [shape: bf16[768,128], index: 3, kind: input, shape index: {}]
  %s4 = inlined_call_operand.vmem [shape: f32[3,256], index: 4, kind: input, shape index: {}]
  %s5 = inlined_call_operand.vmem [shape: f32[3,256], index: 5, kind: input, shape index: {}]
  %s6 = inlined_call_operand.vmem [shape: f32[3,128], index: 6, kind: input, shape index: {}]
  %s7 = inlined_call_operand.hbm [shape: f32[8,128], index: 7, kind: output, shape index: {}]
  %s8 = sld [smem:[#allocation0]]
  $region54: #{tpu_custom_call.1} parent=0
    _
  %s10 = ssub.s32 1, %s8
  %s11 = scalar_select 0, %s10, %s8
  $region1: #{tpu_custom_call.1} parent=0
    #allocation2 [shape = 'u8[4096]{0}', space=vmem, size = 0x1000, scoped, tag = 'input window, operand 0, single buffered']
    #allocation3 [shape = 's32[1]{0}', space=sflag, size = 0x4, scoped, tag = 'scoped memory for tpu_custom_call.1']
    #allocation4 [shape = 's32[1]{0}', space=sflag, size = 0x4, scoped, tag = 'scoped memory for tpu_custom_call.1']
    #allocation5 [shape = 'u8[196608]{0}', space=vmem, size = 0x30000, scoped, tag = 'input window, operand 1, single buffered']
    #allocation6 [shape = 's32[1]{0}', space=sflag, size = 0x4, scoped, tag = 'scoped memory for tpu_custom_call.1']
    #allocation7 [shape = 'u8[393216]{0}', space=vmem, size = 0x60000, scoped, tag = 'input window, operand 2, single buffered']
    #allocation8 [shape = 'u8[196608]{0}', space=vmem, size = 0x30000, scoped, tag = 'input window, operand 3, single buffered']
    #allocation9 [shape = 's32[1]{0}', space=sflag, size = 0x4, scoped, tag = 'scoped memory for tpu_custom_call.1']
    #allocation10 [shape = 'u8[4096]{0}', space=vmem, size = 0x1000, scoped, tag = 'output window, operand 0, single buffered']
    %12 = vsyncpa [#allocation3], 0
    %13 = vsyncpa [#allocation6], 0
    %14 = vsyncpa [#allocation9], 0
    %15 = vsyncpa [#allocation4], 0
    // Predicated region
    $region2: #{tpu_custom_call.1} parent=1 // pred_check
      _
    $region3: #{tpu_custom_call.1} parent=1 // pred_check_branch
      %17 = sbr.rel (0) target = $region5
    $region4: #{tpu_custom_call.1} parent=1 // pred_region
      %s19 = ssub.s32 128, 128
      %20 = vsyncadd [#allocation3], %s19
      %s22 = sshll.u32 [#allocation2], 4
      %s23 = int_to_ptr.vmem [resolvable:$true] %s22
      %25 = dma.hbm_to_vmem [thread:$0]  %s0, 128, %s23, [#allocation3]
    $region5: #{tpu_custom_call.1} parent=1 // pred_fallthru
      _
    // Predicated region
    $region6: #{tpu_custom_call.1} parent=1 // pred_check
      _
    $region7: #{tpu_custom_call.1} parent=1 // pred_check_branch
      %27 = sbr.rel (0) target = $region9
    $region8: #{tpu_custom_call.1} parent=1 // pred_region
      %s29 = ssub.s32 6144, 6144
      %30 = vsyncadd [#allocation6], %s29
      %s31 = sshll.u32 [#allocation5], 4
      %s32 = int_to_ptr.vmem [resolvable:$true] %s31
      %37 = dma.hbm_to_vmem [thread:$0]  %s1, 6144, %s32, [#allocation6], 128, 128, 8
    $region9: #{tpu_custom_call.1} parent=1 // pred_fallthru
      _
    // Predicated region
    $region10: #{tpu_custom_call.1} parent=1 // pred_check
      _
    $region11: #{tpu_custom_call.1} parent=1 // pred_check_branch
      %39 = sbr.rel (0) target = $region13
    $region12: #{tpu_custom_call.1} parent=1 // pred_region
      %s41 = ssub.s32 12288, 12288
      %42 = vsyncadd [#allocation6], %s41
      %s43 = sshll.u32 [#allocation7], 4
      %s44 = int_to_ptr.vmem [resolvable:$true] %s43
      %49 = dma.hbm_to_vmem [thread:$0]  %s2, 12288, %s44, [#allocation6], 128, 128, 8
    $region13: #{tpu_custom_call.1} parent=1 // pred_fallthru
      _
    // Predicated region
    $region14: #{tpu_custom_call.1} parent=1 // pred_check
      _
    $region15: #{tpu_custom_call.1} parent=1 // pred_check_branch
      %51 = sbr.rel (0) target = $region17
    $region16: #{tpu_custom_call.1} parent=1 // pred_region
      %s53 = ssub.s32 6144, 6144
      %54 = vsyncadd [#allocation9], %s53
      %s55 = sshll.u32 [#allocation8], 4
      %s56 = int_to_ptr.vmem [resolvable:$true] %s55
      %61 = dma.hbm_to_vmem [thread:$0]  %s3, 6144, %s56, [#allocation9], 64, 64, 4
    $region17: #{tpu_custom_call.1} parent=1 // pred_fallthru
      _
    // Predicated region
    $region18: #{tpu_custom_call.1} parent=1 // pred_check
      _
    $region19: #{tpu_custom_call.1} parent=1 // pred_check_branch
      %63 = sbr.rel (0) target = $region21
    $region20: #{tpu_custom_call.1} parent=1 // pred_region
      _
    $region21: #{tpu_custom_call.1} parent=1 // pred_fallthru
      _
    // Predicated region
    $region22: #{tpu_custom_call.1} parent=1 // pred_check
      _
    $region23: #{tpu_custom_call.1} parent=1 // pred_check_branch
      %65 = sbr.rel (0) target = $region25
    $region24: #{tpu_custom_call.1} parent=1 // pred_region
      _
    $region25: #{tpu_custom_call.1} parent=1 // pred_fallthru
      _
    // Predicated region
    $region26: #{tpu_custom_call.1} parent=1 // pred_check
      _
    $region27: #{tpu_custom_call.1} parent=1 // pred_check_branch
      %67 = sbr.rel (0) target = $region29
    $region28: #{tpu_custom_call.1} parent=1 // pred_region
      _
    $region29: #{tpu_custom_call.1} parent=1 // pred_fallthru
      _
    // Predicated region
    $region30: #{tpu_custom_call.1} parent=1 // pred_check
      _
    $region31: #{tpu_custom_call.1} parent=1 // pred_check_branch
      %69 = sbr.rel (0) target = $region33
    $region32: #{tpu_custom_call.1} parent=1 // pred_region
      %70 = dma.done [#allocation3], 128
    $region33: #{tpu_custom_call.1} parent=1 // pred_fallthru
      _
    // Predicated region
    $region34: #{tpu_custom_call.1} parent=1 // pred_check
      _
    $region35: #{tpu_custom_call.1} parent=1 // pred_check_branch
      %72 = sbr.rel (0) target = $region37
    $region36: #{tpu_custom_call.1} parent=1 // pred_region
      %73 = dma.done [#allocation6], 6144
    $region37: #{tpu_custom_call.1} parent=1 // pred_fallthru
      _
    // Predicated region
    $region38: #{tpu_custom_call.1} parent=1 // pred_check
      _
    $region39: #{tpu_custom_call.1} parent=1 // pred_check_branch
      %75 = sbr.rel (0) target = $region41
    $region40: #{tpu_custom_call.1} parent=1 // pred_region
      %76 = dma.done [#allocation6], 12288
    $region41: #{tpu_custom_call.1} parent=1 // pred_fallthru
      _
    // Predicated region
    $region42: #{tpu_custom_call.1} parent=1 // pred_check
      _
    $region43: #{tpu_custom_call.1} parent=1 // pred_check_branch
      %78 = sbr.rel (0) target = $region45
    $region44: #{tpu_custom_call.1} parent=1 // pred_region
      %79 = dma.done [#allocation9], 6144
    $region45: #{tpu_custom_call.1} parent=1 // pred_fallthru
      _
    %v81 = vld [vmem:[#allocation2] sm:$0xff]
    %v82 = vld [vmem:[#allocation5] sm:$0xff]
    %v83 = vld [vmem:[#allocation5 + $0x8] sm:$0xff]
    %v84 = vld [vmem:[#allocation5 + $0x10] sm:$0xff]
    %v85 = vld [vmem:[#allocation5 + $0x18] sm:$0xff]
    %v86 = vld [vmem:[#allocation5 + $0x20] sm:$0xff]
    %v87 = vld [vmem:[#allocation5 + $0x28] sm:$0xff]
    %v88 = vld [vmem:[#allocation5 + $0x30] sm:$0xff]
    %v89 = vld [vmem:[#allocation5 + $0x38] sm:$0xff]
    %v90 = vld [vmem:[#allocation5 + $0x40] sm:$0xff]
    %v91 = vld [vmem:[#allocation5 + $0x48] sm:$0xff]
    %v92 = vld [vmem:[#allocation5 + $0x50] sm:$0xff]
    %v93 = vld [vmem:[#allocation5 + $0x58] sm:$0xff]
    %v94 = vld [vmem:[#allocation5 + $0x60] sm:$0xff]
    %v95 = vld [vmem:[#allocation5 + $0x68] sm:$0xff]
    %v96 = vld [vmem:[#allocation5 + $0x70] sm:$0xff]
    %v97 = vld [vmem:[#allocation5 + $0x78] sm:$0xff]
    %v98 = vld [vmem:[#allocation7] sm:$0xff]
    %v99 = vld [vmem:[#allocation7 + $0x8] sm:$0xff]
    %v100 = vld [vmem:[#allocation7 + $0x10] sm:$0xff]
    %v101 = vld [vmem:[#allocation7 + $0x18] sm:$0xff]
    %v102 = vld [vmem:[#allocation7 + $0x20] sm:$0xff]
    %v103 = vld [vmem:[#allocation7 + $0x28] sm:$0xff]
    %v104 = vld [vmem:[#allocation7 + $0x30] sm:$0xff]
    %v105 = vld [vmem:[#allocation7 + $0x38] sm:$0xff]
    %v106 = vld [vmem:[#allocation7 + $0x40] sm:$0xff]
    %v107 = vld [vmem:[#allocation7 + $0x48] sm:$0xff]
    %v108 = vld [vmem:[#allocation7 + $0x50] sm:$0xff]
    %v109 = vld [vmem:[#allocation7 + $0x58] sm:$0xff]
    %v110 = vld [vmem:[#allocation7 + $0x60] sm:$0xff]
    %v111 = vld [vmem:[#allocation7 + $0x68] sm:$0xff]
    %v112 = vld [vmem:[#allocation7 + $0x70] sm:$0xff]
    %v113 = vld [vmem:[#allocation7 + $0x78] sm:$0xff]
    %v114 = vld [vmem:[#allocation7 + $0x80] sm:$0xff]
    %v115 = vld [vmem:[#allocation7 + $0x88] sm:$0xff]
    %v116 = vld [vmem:[#allocation7 + $0x90] sm:$0xff]
    %v117 = vld [vmem:[#allocation7 + $0x98] sm:$0xff]
    %v118 = vld [vmem:[#allocation7 + $0xa0] sm:$0xff]
    %v119 = vld [vmem:[#allocation7 + $0xa8] sm:$0xff]
    %v120 = vld [vmem:[#allocation7 + $0xb0] sm:$0xff]
    %v121 = vld [vmem:[#allocation7 + $0xb8] sm:$0xff]
    %v122 = vld [vmem:[#allocation7 + $0xc0] sm:$0xff]
    %v123 = vld [vmem:[#allocation7 + $0xc8] sm:$0xff]
    %v124 = vld [vmem:[#allocation7 + $0xd0] sm:$0xff]
    %v125 = vld [vmem:[#allocation7 + $0xd8] sm:$0xff]
    %v126 = vld [vmem:[#allocation7 + $0xe0] sm:$0xff]
    %v127 = vld [vmem:[#allocation7 + $0xe8] sm:$0xff]
    %v128 = vld [vmem:[#allocation7 + $0xf0] sm:$0xff]
    %v129 = vld [vmem:[#allocation7 + $0xf8] sm:$0xff]
    %v130 = vld [vmem:[#allocation8] sm:$0xf]
    %v131 = vld [vmem:[#allocation8 + $0x4] sm:$0xf]
    %v132 = vld [vmem:[#allocation8 + $0x8] sm:$0xf]
    %v133 = vld [vmem:[#allocation8 + $0xc] sm:$0xf]
    %v134 = vld [vmem:[#allocation8 + $0x10] sm:$0xf]
    %v135 = vld [vmem:[#allocation8 + $0x14] sm:$0xf]
    %v136 = vld [vmem:[#allocation8 + $0x18] sm:$0xf]
    %v137 = vld [vmem:[#allocation8 + $0x1c] sm:$0xf]
    %v138 = vld [vmem:[#allocation8 + $0x20] sm:$0xf]
    %v139 = vld [vmem:[#allocation8 + $0x24] sm:$0xf]
    %v140 = vld [vmem:[#allocation8 + $0x28] sm:$0xf]
    %v141 = vld [vmem:[#allocation8 + $0x2c] sm:$0xf]
    %v142 = vld [vmem:[#allocation8 + $0x30] sm:$0xf]
    %v143 = vld [vmem:[#allocation8 + $0x34] sm:$0xf]
    %v144 = vld [vmem:[#allocation8 + $0x38] sm:$0xf]
    %v145 = vld [vmem:[#allocation8 + $0x3c] sm:$0xf]
    %v146 = vld [vmem:[#allocation8 + $0x40] sm:$0xf]
    %v147 = vld [vmem:[#allocation8 + $0x44] sm:$0xf]
    %v148 = vld [vmem:[#allocation8 + $0x48] sm:$0xf]
    %v149 = vld [vmem:[#allocation8 + $0x4c] sm:$0xf]
    %v150 = vld [vmem:[#allocation8 + $0x50] sm:$0xf]
    %v151 = vld [vmem:[#allocation8 + $0x54] sm:$0xf]
    %v152 = vld [vmem:[#allocation8 + $0x58] sm:$0xf]
    %v153 = vld [vmem:[#allocation8 + $0x5c] sm:$0xf]
    %v154 = vld [vmem:[#allocation8 + $0x60] sm:$0xf]
    %v155 = vld [vmem:[#allocation8 + $0x64] sm:$0xf]
    %v156 = vld [vmem:[#allocation8 + $0x68] sm:$0xf]
    %v157 = vld [vmem:[#allocation8 + $0x6c] sm:$0xf]
    %v158 = vld [vmem:[#allocation8 + $0x70] sm:$0xf]
    %v159 = vld [vmem:[#allocation8 + $0x74] sm:$0xf]
    %v160 = vld [vmem:[#allocation8 + $0x78] sm:$0xf]
    %v161 = vld [vmem:[#allocation8 + $0x7c] sm:$0xf]
    %v162 = vld [vmem:[%s4] ss:$4 sm:$0x3]
    %v163 = vld [vmem:[%s5] ss:$4 sm:$0x3]
    %v164 = vld [vmem:[%s6] sm:$0x1]
    %v165 = vpack.c.bf16 %v81, %v81
    %v167 = vlaneseq
    %v168 = vshrl.u32 %v167, 7
    %v169 = vsub.s32 0, %v168
    %v170 = vrot.slane %v162, %v169
    %v171 = vlaneseq
    %v172 = vshrl.u32 %v171, 7
    %v173 = vsub.s32 1, %v172
    %v174 = vrot.slane %v162, %v173
    %v193 = vunpack.c.l.b16 %v82
    %v194 = vunpack.c.h.b16 %v82
    %v195 = vunpack.c.l.b16 %v83
    %v196 = vunpack.c.h.b16 %v83
    %v197 = vunpack.c.l.b16 %v84
    %v198 = vunpack.c.h.b16 %v84
    %v199 = vunpack.c.l.b16 %v85
    %v200 = vunpack.c.h.b16 %v85
    %v201 = vunpack.c.l.b16 %v86
    %v202 = vunpack.c.h.b16 %v86
    %v203 = vunpack.c.l.b16 %v87
    %v204 = vunpack.c.h.b16 %v87
    %v205 = vunpack.c.l.b16 %v88
    %v206 = vunpack.c.h.b16 %v88
    %v207 = vunpack.c.l.b16 %v89
    %v208 = vunpack.c.h.b16 %v89
    %v209 = vunpack.c.l.b16 %v90
    %v210 = vunpack.c.h.b16 %v90
    %v211 = vunpack.c.l.b16 %v91
    %v212 = vunpack.c.h.b16 %v91
    %v213 = vunpack.c.l.b16 %v92
    %v214 = vunpack.c.h.b16 %v92
    %v215 = vunpack.c.l.b16 %v93
    %v216 = vunpack.c.h.b16 %v93
    %v217 = vunpack.c.l.b16 %v94
    %v218 = vunpack.c.h.b16 %v94
    %v219 = vunpack.c.l.b16 %v95
    %v220 = vunpack.c.h.b16 %v95
    %v221 = vunpack.c.l.b16 %v96
    %v222 = vunpack.c.h.b16 %v96
    %v223 = vunpack.c.l.b16 %v97
    %v224 = vunpack.c.h.b16 %v97
    %v225 = vpack.c.b16 %v195, %v193
    %v226 = vpack.c.b16 %v196, %v194
    %v227 = vpack.c.b16 %v199, %v197
    %v228 = vpack.c.b16 %v200, %v198
    %v229 = vpack.c.b16 %v203, %v201
    %v230 = vpack.c.b16 %v204, %v202
    %v231 = vpack.c.b16 %v207, %v205
    %v232 = vpack.c.b16 %v208, %v206
    %v233 = vpack.c.b16 %v211, %v209
    %v234 = vpack.c.b16 %v212, %v210
    %v235 = vpack.c.b16 %v215, %v213
    %v236 = vpack.c.b16 %v216, %v214
    %v237 = vpack.c.b16 %v219, %v217
    %v238 = vpack.c.b16 %v220, %v218
    %v239 = vpack.c.b16 %v223, %v221
    %v240 = vpack.c.b16 %v224, %v222
    %257 = vmatprep.subr.bf16.mxu0 %v226
    %258 = vmatpush1.bf16.msra.mxu0 %v225
    %259 = vmatprep.subr.bf16.mxu0 %v228
    %260 = vmatpush1.bf16.msra.mxu0 %v227
    %261 = vmatprep.subr.bf16.mxu0 %v230
    %262 = vmatpush1.bf16.msra.mxu0 %v229
    %263 = vmatprep.subr.bf16.mxu0 %v232
    %264 = vmatpush1.bf16.msra.mxu0 %v231
    %265 = vmatprep.subr.bf16.mxu0 %v234
    %266 = vmatpush1.bf16.msra.mxu0 %v233
    %267 = vmatprep.subr.bf16.mxu0 %v236
    %268 = vmatpush1.bf16.msra.mxu0 %v235
    %269 = vmatprep.subr.bf16.mxu0 %v238
    %270 = vmatpush1.bf16.msra.mxu0 %v237
    %271 = vmatprep.subr.bf16.mxu0 %v240
    %272 = vmatpush1.bf16.msra.mxu0 %v239
    %273 = vmatprep.subr.bf16.mxu0 0
    %274 = vmatpush1.bf16.msra.mxu0 0
    %275 = vmatprep.subr.bf16.mxu0 0
    %276 = vmatpush1.bf16.msra.mxu0 0
    %277 = vmatprep.subr.bf16.mxu0 0
    %278 = vmatpush1.bf16.msra.mxu0 0
    %279 = vmatprep.subr.bf16.mxu0 0
    %280 = vmatpush1.bf16.msra.mxu0 0
    %281 = vmatprep.subr.bf16.mxu0 0
    %282 = vmatpush1.bf16.msra.mxu0 0
    %283 = vmatprep.subr.bf16.mxu0 0
    %284 = vmatpush1.bf16.msra.mxu0 0
    %285 = vmatprep.subr.bf16.mxu0 0
    %286 = vmatpush1.bf16.msra.mxu0 0
    %287 = vmatprep.subr.bf16.mxu0 0
    %288 = vmatpush1.bf16.msra.mxu0 0
    %289 = vmatprep.mubr.bf16.mxu0 0
    %290 = vmatmul.mubr.bf16.gmra.mrb[0].mxu0 %v165
    %v291 = vpop.f32.mrb[0].mxu0
    %v292 = vadd.f32 %v170, %v291
    %v293 = vpop.f32.mrb[0].mxu0
    %v294 = vadd.f32 %v174, %v293
    %v295 = vpop.f32.mrb[0].mxu0
    %v296 = vpop.f32.mrb[0].mxu0
    %297 = vdwg.mxu0
    %v298 = vmax.f32 %v292, 0.0
    %v299 = vmax.f32 %v294, 0.0
    %v300 = vpack.c.bf16 %v298, %v298
    %v301 = vpack.c.bf16 %v299, %v299
    %v303 = vlaneseq
    %v304 = vshrl.u32 %v303, 7
    %v305 = vsub.s32 0, %v304
    %v306 = vrot.slane %v163, %v305
    %v307 = vlaneseq
    %v308 = vshrl.u32 %v307, 7
    %v309 = vsub.s32 1, %v308
    %v310 = vrot.slane %v163, %v309
    %v345 = vunpack.c.l.b16 %v98
    %v346 = vunpack.c.h.b16 %v98
    %v347 = vunpack.c.l.b16 %v99
    %v348 = vunpack.c.h.b16 %v99
    %v349 = vunpack.c.l.b16 %v100
    %v350 = vunpack.c.h.b16 %v100
    %v351 = vunpack.c.l.b16 %v101
    %v352 = vunpack.c.h.b16 %v101
    %v353 = vunpack.c.l.b16 %v102
    %v354 = vunpack.c.h.b16 %v102
    %v355 = vunpack.c.l.b16 %v103
    %v356 = vunpack.c.h.b16 %v103
    %v357 = vunpack.c.l.b16 %v104
    %v358 = vunpack.c.h.b16 %v104
    %v359 = vunpack.c.l.b16 %v105
    %v360 = vunpack.c.h.b16 %v105
    %v361 = vunpack.c.l.b16 %v106
    %v362 = vunpack.c.h.b16 %v106
    %v363 = vunpack.c.l.b16 %v107
    %v364 = vunpack.c.h.b16 %v107
    %v365 = vunpack.c.l.b16 %v108
    %v366 = vunpack.c.h.b16 %v108
    %v367 = vunpack.c.l.b16 %v109
    %v368 = vunpack.c.h.b16 %v109
    %v369 = vunpack.c.l.b16 %v110
    %v370 = vunpack.c.h.b16 %v110
    %v371 = vunpack.c.l.b16 %v111
    %v372 = vunpack.c.h.b16 %v111
    %v373 = vunpack.c.l.b16 %v112
    %v374 = vunpack.c.h.b16 %v112
    %v375 = vunpack.c.l.b16 %v113
    %v376 = vunpack.c.h.b16 %v113
    %v377 = vunpack.c.l.b16 %v114
    %v378 = vunpack.c.h.b16 %v114
    %v379 = vunpack.c.l.b16 %v115
    %v380 = vunpack.c.h.b16 %v115
    %v381 = vunpack.c.l.b16 %v116
    %v382 = vunpack.c.h.b16 %v116
    %v383 = vunpack.c.l.b16 %v117
    %v384 = vunpack.c.h.b16 %v117
    %v385 = vunpack.c.l.b16 %v118
    %v386 = vunpack.c.h.b16 %v118
    %v387 = vunpack.c.l.b16 %v119
    %v388 = vunpack.c.h.b16 %v119
    %v389 = vunpack.c.l.b16 %v120
    %v390 = vunpack.c.h.b16 %v120
    %v391 = vunpack.c.l.b16 %v121
    %v392 = vunpack.c.h.b16 %v121
    %v393 = vunpack.c.l.b16 %v122
    %v394 = vunpack.c.h.b16 %v122
    %v395 = vunpack.c.l.b16 %v123
    %v396 = vunpack.c.h.b16 %v123
    %v397 = vunpack.c.l.b16 %v124
    %v398 = vunpack.c.h.b16 %v124
    %v399 = vunpack.c.l.b16 %v125
    %v400 = vunpack.c.h.b16 %v125
    %v401 = vunpack.c.l.b16 %v126
    %v402 = vunpack.c.h.b16 %v126
    %v403 = vunpack.c.l.b16 %v127
    %v404 = vunpack.c.h.b16 %v127
    %v405 = vunpack.c.l.b16 %v128
    %v406 = vunpack.c.h.b16 %v128
    %v407 = vunpack.c.l.b16 %v129
    %v408 = vunpack.c.h.b16 %v129
    %v409 = vpack.c.b16 %v347, %v345
    %v410 = vpack.c.b16 %v348, %v346
    %v411 = vpack.c.b16 %v351, %v349
    %v412 = vpack.c.b16 %v352, %v350
    %v413 = vpack.c.b16 %v355, %v353
    %v414 = vpack.c.b16 %v356, %v354
    %v415 = vpack.c.b16 %v359, %v357
    %v416 = vpack.c.b16 %v360, %v358
    %v417 = vpack.c.b16 %v363, %v361
    %v418 = vpack.c.b16 %v364, %v362
    %v419 = vpack.c.b16 %v367, %v365
    %v420 = vpack.c.b16 %v368, %v366
    %v421 = vpack.c.b16 %v371, %v369
    %v422 = vpack.c.b16 %v372, %v370
    %v423 = vpack.c.b16 %v375, %v373
    %v424 = vpack.c.b16 %v376, %v374
    %v425 = vpack.c.b16 %v379, %v377
    %v426 = vpack.c.b16 %v380, %v378
    %v427 = vpack.c.b16 %v383, %v381
    %v428 = vpack.c.b16 %v384, %v382
    %v429 = vpack.c.b16 %v387, %v385
    %v430 = vpack.c.b16 %v388, %v386
    %v431 = vpack.c.b16 %v391, %v389
    %v432 = vpack.c.b16 %v392, %v390
    %v433 = vpack.c.b16 %v395, %v393
    %v434 = vpack.c.b16 %v396, %v394
    %v435 = vpack.c.b16 %v399, %v397
    %v436 = vpack.c.b16 %v400, %v398
    %v437 = vpack.c.b16 %v403, %v401
    %v438 = vpack.c.b16 %v404, %v402
    %v439 = vpack.c.b16 %v407, %v405
    %v440 = vpack.c.b16 %v408, %v406
    %473 = vmatprep.subr.bf16.mxu0 %v410
    %474 = vmatpush1.bf16.msra.mxu0 %v409
    %475 = vmatprep.subr.bf16.mxu0 %v412
    %476 = vmatpush1.bf16.msra.mxu0 %v411
    %477 = vmatprep.subr.bf16.mxu0 %v414
    %478 = vmatpush1.bf16.msra.mxu0 %v413
    %479 = vmatprep.subr.bf16.mxu0 %v416
    %480 = vmatpush1.bf16.msra.mxu0 %v415
    %481 = vmatprep.subr.bf16.mxu0 %v418
    %482 = vmatpush1.bf16.msra.mxu0 %v417
    %483 = vmatprep.subr.bf16.mxu0 %v420
    %484 = vmatpush1.bf16.msra.mxu0 %v419
    %485 = vmatprep.subr.bf16.mxu0 %v422
    %486 = vmatpush1.bf16.msra.mxu0 %v421
    %487 = vmatprep.subr.bf16.mxu0 %v424
    %488 = vmatpush1.bf16.msra.mxu0 %v423
    %489 = vmatprep.subr.bf16.mxu0 %v426
    %490 = vmatpush1.bf16.msra.mxu0 %v425
    %491 = vmatprep.subr.bf16.mxu0 %v428
    %492 = vmatpush1.bf16.msra.mxu0 %v427
    %493 = vmatprep.subr.bf16.mxu0 %v430
    %494 = vmatpush1.bf16.msra.mxu0 %v429
    %495 = vmatprep.subr.bf16.mxu0 %v432
    %496 = vmatpush1.bf16.msra.mxu0 %v431
    %497 = vmatprep.subr.bf16.mxu0 %v434
    %498 = vmatpush1.bf16.msra.mxu0 %v433
    %499 = vmatprep.subr.bf16.mxu0 %v436
    %500 = vmatpush1.bf16.msra.mxu0 %v435
    %501 = vmatprep.subr.bf16.mxu0 %v438
    %502 = vmatpush1.bf16.msra.mxu0 %v437
    %503 = vmatprep.subr.bf16.mxu0 %v440
    %504 = vmatpush1.bf16.msra.mxu0 %v439
    %505 = vmatprep.mubr.bf16.mxu0 %v301
    %506 = vmatmul.mubr.bf16.gmra.mrb[0].mxu0 %v300
    %v507 = vpop.f32.mrb[0].mxu0
    %v508 = vadd.f32 %v306, %v507
    %v509 = vpop.f32.mrb[0].mxu0
    %v510 = vadd.f32 %v310, %v509
    %v511 = vpop.f32.mrb[0].mxu0
    %v512 = vpop.f32.mrb[0].mxu0
    %513 = vdwg.mxu0
    %v514 = vmax.f32 %v508, 0.0
    %v515 = vmax.f32 %v510, 0.0
    %v516 = vpack.c.bf16 %v514, %v514
    %v517 = vpack.c.bf16 %v515, %v515
    %v518 = vlaneseq
    %v519 = vshrl.u32 %v518, 7
    %v520 = vsub.s32 0, %v519
    %v521 = vrot.slane %v164, %v520
    %v554 = vunpack.c.l.b16 %v130
    %v555 = vunpack.c.l.b16 %v131
    %v556 = vunpack.c.l.b16 %v132
    %v557 = vunpack.c.l.b16 %v133
    %v558 = vunpack.c.l.b16 %v134
    %v559 = vunpack.c.l.b16 %v135
    %v560 = vunpack.c.l.b16 %v136
    %v561 = vunpack.c.l.b16 %v137
    %v562 = vunpack.c.l.b16 %v138
    %v563 = vunpack.c.l.b16 %v139
    %v564 = vunpack.c.l.b16 %v140
    %v565 = vunpack.c.l.b16 %v141
    %v566 = vunpack.c.l.b16 %v142
    %v567 = vunpack.c.l.b16 %v143
    %v568 = vunpack.c.l.b16 %v144
    %v569 = vunpack.c.l.b16 %v145
    %v570 = vunpack.c.l.b16 %v146
    %v571 = vunpack.c.l.b16 %v147
    %v572 = vunpack.c.l.b16 %v148
    %v573 = vunpack.c.l.b16 %v149
    %v574 = vunpack.c.l.b16 %v150
    %v575 = vunpack.c.l.b16 %v151
    %v576 = vunpack.c.l.b16 %v152
    %v577 = vunpack.c.l.b16 %v153
    %v578 = vunpack.c.l.b16 %v154
    %v579 = vunpack.c.l.b16 %v155
    %v580 = vunpack.c.l.b16 %v156
    %v581 = vunpack.c.l.b16 %v157
    %v582 = vunpack.c.l.b16 %v158
    %v583 = vunpack.c.l.b16 %v159
    %v584 = vunpack.c.l.b16 %v160
    %v585 = vunpack.c.l.b16 %v161
    %v586 = vpack.c.b16 %v555, %v554
    %v587 = vpack.c.b16 %v557, %v556
    %v588 = vpack.c.b16 %v559, %v558
    %v589 = vpack.c.b16 %v561, %v560
    %v590 = vpack.c.b16 %v563, %v562
    %v591 = vpack.c.b16 %v565, %v564
    %v592 = vpack.c.b16 %v567, %v566
    %v593 = vpack.c.b16 %v569, %v568
    %v594 = vpack.c.b16 %v571, %v570
    %v595 = vpack.c.b16 %v573, %v572
    %v596 = vpack.c.b16 %v575, %v574
    %v597 = vpack.c.b16 %v577, %v576
    %v598 = vpack.c.b16 %v579, %v578
    %v599 = vpack.c.b16 %v581, %v580
    %v600 = vpack.c.b16 %v583, %v582
    %v601 = vpack.c.b16 %v585, %v584
    %618 = vmatprep.subr.bf16.mxu0 0
    %619 = vmatpush1.bf16.msra.mxu0 %v586
    %620 = vmatprep.subr.bf16.mxu0 0
    %621 = vmatpush1.bf16.msra.mxu0 %v587
    %622 = vmatprep.subr.bf16.mxu0 0
    %623 = vmatpush1.bf16.msra.mxu0 %v588
    %624 = vmatprep.subr.bf16.mxu0 0
    %625 = vmatpush1.bf16.msra.mxu0 %v589
    %626 = vmatprep.subr.bf16.mxu0 0
    %627 = vmatpush1.bf16.msra.mxu0 %v590
    %628 = vmatprep.subr.bf16.mxu0 0
    %629 = vmatpush1.bf16.msra.mxu0 %v591
    %630 = vmatprep.subr.bf16.mxu0 0
    %631 = vmatpush1.bf16.msra.mxu0 %v592
    %632 = vmatprep.subr.bf16.mxu0 0
    %633 = vmatpush1.bf16.msra.mxu0 %v593
    %634 = vmatprep.subr.bf16.mxu0 0
    %635 = vmatpush1.bf16.msra.mxu0 %v594
    %636 = vmatprep.subr.bf16.mxu0 0
    %637 = vmatpush1.bf16.msra.mxu0 %v595
    %638 = vmatprep.subr.bf16.mxu0 0
    %639 = vmatpush1.bf16.msra.mxu0 %v596
    %640 = vmatprep.subr.bf16.mxu0 0
    %641 = vmatpush1.bf16.msra.mxu0 %v597
    %642 = vmatprep.subr.bf16.mxu0 0
    %643 = vmatpush1.bf16.msra.mxu0 %v598
    %644 = vmatprep.subr.bf16.mxu0 0
    %645 = vmatpush1.bf16.msra.mxu0 %v599
    %646 = vmatprep.subr.bf16.mxu0 0
    %647 = vmatpush1.bf16.msra.mxu0 %v600
    %648 = vmatprep.subr.bf16.mxu0 0
    %649 = vmatpush1.bf16.msra.mxu0 %v601
    %650 = vmatprep.mubr.bf16.mxu0 %v517
    %651 = vmatmul.mubr.bf16.gmra.mrb[0].mxu0 %v516
    %v652 = vpop.f32.mrb[0].mxu0
    %v653 = vadd.f32 %v521, %v652
    %v654 = vpop.f32.mrb[0].mxu0
    %v655 = vpop.f32.mrb[0].mxu0
    %v656 = vpop.f32.mrb[0].mxu0
    %657 = vdwg.mxu0
    %v658 = vmax.f32 %v653, 0.0
    %v659 = vld [vmem:[#allocation5 + $0x80] sm:$0xff]
    %v660 = vld [vmem:[#allocation5 + $0x88] sm:$0xff]
    %v661 = vld [vmem:[#allocation5 + $0x90] sm:$0xff]
    %v662 = vld [vmem:[#allocation5 + $0x98] sm:$0xff]
    %v663 = vld [vmem:[#allocation5 + $0xa0] sm:$0xff]
    %v664 = vld [vmem:[#allocation5 + $0xa8] sm:$0xff]
    %v665 = vld [vmem:[#allocation5 + $0xb0] sm:$0xff]
    %v666 = vld [vmem:[#allocation5 + $0xb8] sm:$0xff]
    %v667 = vld [vmem:[#allocation5 + $0xc0] sm:$0xff]
    %v668 = vld [vmem:[#allocation5 + $0xc8] sm:$0xff]
    %v669 = vld [vmem:[#allocation5 + $0xd0] sm:$0xff]
    %v670 = vld [vmem:[#allocation5 + $0xd8] sm:$0xff]
    %v671 = vld [vmem:[#allocation5 + $0xe0] sm:$0xff]
    %v672 = vld [vmem:[#allocation5 + $0xe8] sm:$0xff]
    %v673 = vld [vmem:[#allocation5 + $0xf0] sm:$0xff]
    %v674 = vld [vmem:[#allocation5 + $0xf8] sm:$0xff]
    %v675 = vld [vmem:[#allocation7 + $0x100] sm:$0xff]
    %v676 = vld [vmem:[#allocation7 + $0x108] sm:$0xff]
    %v677 = vld [vmem:[#allocation7 + $0x110] sm:$0xff]
    %v678 = vld [vmem:[#allocation7 + $0x118] sm:$0xff]
    %v679 = vld [vmem:[#allocation7 + $0x120] sm:$0xff]
    %v680 = vld [vmem:[#allocation7 + $0x128] sm:$0xff]
    %v681 = vld [vmem:[#allocation7 + $0x130] sm:$0xff]
    %v682 = vld [vmem:[#allocation7 + $0x138] sm:$0xff]
    %v683 = vld [vmem:[#allocation7 + $0x140] sm:$0xff]
    %v684 = vld [vmem:[#allocation7 + $0x148] sm:$0xff]
    %v685 = vld [vmem:[#allocation7 + $0x150] sm:$0xff]
    %v686 = vld [vmem:[#allocation7 + $0x158] sm:$0xff]
    %v687 = vld [vmem:[#allocation7 + $0x160] sm:$0xff]
    %v688 = vld [vmem:[#allocation7 + $0x168] sm:$0xff]
    %v689 = vld [vmem:[#allocation7 + $0x170] sm:$0xff]
    %v690 = vld [vmem:[#allocation7 + $0x178] sm:$0xff]
    %v691 = vld [vmem:[#allocation7 + $0x180] sm:$0xff]
    %v692 = vld [vmem:[#allocation7 + $0x188] sm:$0xff]
    %v693 = vld [vmem:[#allocation7 + $0x190] sm:$0xff]
    %v694 = vld [vmem:[#allocation7 + $0x198] sm:$0xff]
    %v695 = vld [vmem:[#allocation7 + $0x1a0] sm:$0xff]
    %v696 = vld [vmem:[#allocation7 + $0x1a8] sm:$0xff]
    %v697 = vld [vmem:[#allocation7 + $0x1b0] sm:$0xff]
    %v698 = vld [vmem:[#allocation7 + $0x1b8] sm:$0xff]
    %v699 = vld [vmem:[#allocation7 + $0x1c0] sm:$0xff]
    %v700 = vld [vmem:[#allocation7 + $0x1c8] sm:$0xff]
    %v701 = vld [vmem:[#allocation7 + $0x1d0] sm:$0xff]
    %v702 = vld [vmem:[#allocation7 + $0x1d8] sm:$0xff]
    %v703 = vld [vmem:[#allocation7 + $0x1e0] sm:$0xff]
    %v704 = vld [vmem:[#allocation7 + $0x1e8] sm:$0xff]
    %v705 = vld [vmem:[#allocation7 + $0x1f0] sm:$0xff]
    %v706 = vld [vmem:[#allocation7 + $0x1f8] sm:$0xff]
    %v707 = vld [vmem:[#allocation8 + $0x80] sm:$0xf]
    %v708 = vld [vmem:[#allocation8 + $0x84] sm:$0xf]
    %v709 = vld [vmem:[#allocation8 + $0x88] sm:$0xf]
    %v710 = vld [vmem:[#allocation8 + $0x8c] sm:$0xf]
    %v711 = vld [vmem:[#allocation8 + $0x90] sm:$0xf]
    %v712 = vld [vmem:[#allocation8 + $0x94] sm:$0xf]
    %v713 = vld [vmem:[#allocation8 + $0x98] sm:$0xf]
    %v714 = vld [vmem:[#allocation8 + $0x9c] sm:$0xf]
    %v715 = vld [vmem:[#allocation8 + $0xa0] sm:$0xf]
    %v716 = vld [vmem:[#allocation8 + $0xa4] sm:$0xf]
    %v717 = vld [vmem:[#allocation8 + $0xa8] sm:$0xf]
    %v718 = vld [vmem:[#allocation8 + $0xac] sm:$0xf]
    %v719 = vld [vmem:[#allocation8 + $0xb0] sm:$0xf]
    %v720 = vld [vmem:[#allocation8 + $0xb4] sm:$0xf]
    %v721 = vld [vmem:[#allocation8 + $0xb8] sm:$0xf]
    %v722 = vld [vmem:[#allocation8 + $0xbc] sm:$0xf]
    %v723 = vld [vmem:[#allocation8 + $0xc0] sm:$0xf]
    %v724 = vld [vmem:[#allocation8 + $0xc4] sm:$0xf]
    %v725 = vld [vmem:[#allocation8 + $0xc8] sm:$0xf]
    %v726 = vld [vmem:[#allocation8 + $0xcc] sm:$0xf]
    %v727 = vld [vmem:[#allocation8 + $0xd0] sm:$0xf]
    %v728 = vld [vmem:[#allocation8 + $0xd4] sm:$0xf]
    %v729 = vld [vmem:[#allocation8 + $0xd8] sm:$0xf]
    %v730 = vld [vmem:[#allocation8 + $0xdc] sm:$0xf]
    %v731 = vld [vmem:[#allocation8 + $0xe0] sm:$0xf]
    %v732 = vld [vmem:[#allocation8 + $0xe4] sm:$0xf]
    %v733 = vld [vmem:[#allocation8 + $0xe8] sm:$0xf]
    %v734 = vld [vmem:[#allocation8 + $0xec] sm:$0xf]
    %v735 = vld [vmem:[#allocation8 + $0xf0] sm:$0xf]
    %v736 = vld [vmem:[#allocation8 + $0xf4] sm:$0xf]
    %v737 = vld [vmem:[#allocation8 + $0xf8] sm:$0xf]
    %v738 = vld [vmem:[#allocation8 + $0xfc] sm:$0xf]
    %s739 = scalar_lea.vmem %s4, 1
    %v740 = vld [vmem:[%s739] ss:$4 sm:$0x3]
    %s741 = scalar_lea.vmem %s5, 1
    %v742 = vld [vmem:[%s741] ss:$4 sm:$0x3]
    %v743 = vld [vmem:[%s6 + $0x1] sm:$0x1]
    %v744 = vpack.c.bf16 %v658, %v658
    %v746 = vlaneseq
    %v747 = vshrl.u32 %v746, 7
    %v748 = vsub.s32 0, %v747
    %v749 = vrot.slane %v740, %v748
    %v750 = vlaneseq
    %v751 = vshrl.u32 %v750, 7
    %v752 = vsub.s32 1, %v751
    %v753 = vrot.slane %v740, %v752
    %v772 = vunpack.c.l.b16 %v659
    %v773 = vunpack.c.h.b16 %v659
    %v774 = vunpack.c.l.b16 %v660
    %v775 = vunpack.c.h.b16 %v660
    %v776 = vunpack.c.l.b16 %v661
    %v777 = vunpack.c.h.b16 %v661
    %v778 = vunpack.c.l.b16 %v662
    %v779 = vunpack.c.h.b16 %v662
    %v780 = vunpack.c.l.b16 %v663
    %v781 = vunpack.c.h.b16 %v663
    %v782 = vunpack.c.l.b16 %v664
    %v783 = vunpack.c.h.b16 %v664
    %v784 = vunpack.c.l.b16 %v665
    %v785 = vunpack.c.h.b16 %v665
    %v786 = vunpack.c.l.b16 %v666
    %v787 = vunpack.c.h.b16 %v666
    %v788 = vunpack.c.l.b16 %v667
    %v789 = vunpack.c.h.b16 %v667
    %v790 = vunpack.c.l.b16 %v668
    %v791 = vunpack.c.h.b16 %v668
    %v792 = vunpack.c.l.b16 %v669
    %v793 = vunpack.c.h.b16 %v669
    %v794 = vunpack.c.l.b16 %v670
    %v795 = vunpack.c.h.b16 %v670
    %v796 = vunpack.c.l.b16 %v671
    %v797 = vunpack.c.h.b16 %v671
    %v798 = vunpack.c.l.b16 %v672
    %v799 = vunpack.c.h.b16 %v672
    %v800 = vunpack.c.l.b16 %v673
    %v801 = vunpack.c.h.b16 %v673
    %v802 = vunpack.c.l.b16 %v674
    %v803 = vunpack.c.h.b16 %v674
    %v804 = vpack.c.b16 %v774, %v772
    %v805 = vpack.c.b16 %v775, %v773
    %v806 = vpack.c.b16 %v778, %v776
    %v807 = vpack.c.b16 %v779, %v777
    %v808 = vpack.c.b16 %v782, %v780
    %v809 = vpack.c.b16 %v783, %v781
    %v810 = vpack.c.b16 %v786, %v784
    %v811 = vpack.c.b16 %v787, %v785
    %v812 = vpack.c.b16 %v790, %v788
    %v813 = vpack.c.b16 %v791, %v789
    %v814 = vpack.c.b16 %v794, %v792
    %v815 = vpack.c.b16 %v795, %v793
    %v816 = vpack.c.b16 %v798, %v796
    %v817 = vpack.c.b16 %v799, %v797
    %v818 = vpack.c.b16 %v802, %v800
    %v819 = vpack.c.b16 %v803, %v801
    %836 = vmatprep.subr.bf16.mxu0 %v805
    %837 = vmatpush1.bf16.msra.mxu0 %v804
    %838 = vmatprep.subr.bf16.mxu0 %v807
    %839 = vmatpush1.bf16.msra.mxu0 %v806
    %840 = vmatprep.subr.bf16.mxu0 %v809
    %841 = vmatpush1.bf16.msra.mxu0 %v808
    %842 = vmatprep.subr.bf16.mxu0 %v811
    %843 = vmatpush1.bf16.msra.mxu0 %v810
    %844 = vmatprep.subr.bf16.mxu0 %v813
    %845 = vmatpush1.bf16.msra.mxu0 %v812
    %846 = vmatprep.subr.bf16.mxu0 %v815
    %847 = vmatpush1.bf16.msra.mxu0 %v814
    %848 = vmatprep.subr.bf16.mxu0 %v817
    %849 = vmatpush1.bf16.msra.mxu0 %v816
    %850 = vmatprep.subr.bf16.mxu0 %v819
    %851 = vmatpush1.bf16.msra.mxu0 %v818
    %852 = vmatprep.subr.bf16.mxu0 0
    %853 = vmatpush1.bf16.msra.mxu0 0
    %854 = vmatprep.subr.bf16.mxu0 0
    %855 = vmatpush1.bf16.msra.mxu0 0
    %856 = vmatprep.subr.bf16.mxu0 0
    %857 = vmatpush1.bf16.msra.mxu0 0
    %858 = vmatprep.subr.bf16.mxu0 0
    %859 = vmatpush1.bf16.msra.mxu0 0
    %860 = vmatprep.subr.bf16.mxu0 0
    %861 = vmatpush1.bf16.msra.mxu0 0
    %862 = vmatprep.subr.bf16.mxu0 0
    %863 = vmatpush1.bf16.msra.mxu0 0
    %864 = vmatprep.subr.bf16.mxu0 0
    %865 = vmatpush1.bf16.msra.mxu0 0
    %866 = vmatprep.subr.bf16.mxu0 0
    %867 = vmatpush1.bf16.msra.mxu0 0
    %868 = vmatprep.mubr.bf16.mxu0 0
    %869 = vmatmul.mubr.bf16.gmra.mrb[0].mxu0 %v744
    %v870 = vpop.f32.mrb[0].mxu0
    %v871 = vadd.f32 %v749, %v870
    %v872 = vpop.f32.mrb[0].mxu0
    %v873 = vadd.f32 %v753, %v872
    %v874 = vpop.f32.mrb[0].mxu0
    %v875 = vpop.f32.mrb[0].mxu0
    %876 = vdwg.mxu0
    %v877 = vmax.f32 %v871, 0.0
    %v878 = vmax.f32 %v873, 0.0
    %v879 = vpack.c.bf16 %v877, %v877
    %v880 = vpack.c.bf16 %v878, %v878
    %v882 = vlaneseq
    %v883 = vshrl.u32 %v882, 7
    %v884 = vsub.s32 0, %v883
    %v885 = vrot.slane %v742, %v884
    %v886 = vlaneseq
    %v887 = vshrl.u32 %v886, 7
    %v888 = vsub.s32 1, %v887
    %v889 = vrot.slane %v742, %v888
    %v924 = vunpack.c.l.b16 %v675
    %v925 = vunpack.c.h.b16 %v675
    %v926 = vunpack.c.l.b16 %v676
    %v927 = vunpack.c.h.b16 %v676
    %v928 = vunpack.c.l.b16 %v677
    %v929 = vunpack.c.h.b16 %v677
    %v930 = vunpack.c.l.b16 %v678
    %v931 = vunpack.c.h.b16 %v678
    %v932 = vunpack.c.l.b16 %v679
    %v933 = vunpack.c.h.b16 %v679
    %v934 = vunpack.c.l.b16 %v680
    %v935 = vunpack.c.h.b16 %v680
    %v936 = vunpack.c.l.b16 %v681
    %v937 = vunpack.c.h.b16 %v681
    %v938 = vunpack.c.l.b16 %v682
    %v939 = vunpack.c.h.b16 %v682
    %v940 = vunpack.c.l.b16 %v683
    %v941 = vunpack.c.h.b16 %v683
    %v942 = vunpack.c.l.b16 %v684
    %v943 = vunpack.c.h.b16 %v684
    %v944 = vunpack.c.l.b16 %v685
    %v945 = vunpack.c.h.b16 %v685
    %v946 = vunpack.c.l.b16 %v686
    %v947 = vunpack.c.h.b16 %v686
    %v948 = vunpack.c.l.b16 %v687
    %v949 = vunpack.c.h.b16 %v687
    %v950 = vunpack.c.l.b16 %v688
    %v951 = vunpack.c.h.b16 %v688
    %v952 = vunpack.c.l.b16 %v689
    %v953 = vunpack.c.h.b16 %v689
    %v954 = vunpack.c.l.b16 %v690
    %v955 = vunpack.c.h.b16 %v690
    %v956 = vunpack.c.l.b16 %v691
    %v957 = vunpack.c.h.b16 %v691
    %v958 = vunpack.c.l.b16 %v692
    %v959 = vunpack.c.h.b16 %v692
    %v960 = vunpack.c.l.b16 %v693
    %v961 = vunpack.c.h.b16 %v693
    %v962 = vunpack.c.l.b16 %v694
    %v963 = vunpack.c.h.b16 %v694
    %v964 = vunpack.c.l.b16 %v695
    %v965 = vunpack.c.h.b16 %v695
    %v966 = vunpack.c.l.b16 %v696
    %v967 = vunpack.c.h.b16 %v696
    %v968 = vunpack.c.l.b16 %v697
    %v969 = vunpack.c.h.b16 %v697
    %v970 = vunpack.c.l.b16 %v698
    %v971 = vunpack.c.h.b16 %v698
    %v972 = vunpack.c.l.b16 %v699
    %v973 = vunpack.c.h.b16 %v699
    %v974 = vunpack.c.l.b16 %v700
    %v975 = vunpack.c.h.b16 %v700
    %v976 = vunpack.c.l.b16 %v701
    %v977 = vunpack.c.h.b16 %v701
    %v978 = vunpack.c.l.b16 %v702
    %v979 = vunpack.c.h.b16 %v702
    %v980 = vunpack.c.l.b16 %v703
    %v981 = vunpack.c.h.b16 %v703
    %v982 = vunpack.c.l.b16 %v704
    %v983 = vunpack.c.h.b16 %v704
    %v984 = vunpack.c.l.b16 %v705
    %v985 = vunpack.c.h.b16 %v705
    %v986 = vunpack.c.l.b16 %v706
    %v987 = vunpack.c.h.b16 %v706
    %v988 = vpack.c.b16 %v926, %v924
    %v989 = vpack.c.b16 %v927, %v925
    %v990 = vpack.c.b16 %v930, %v928
    %v991 = vpack.c.b16 %v931, %v929
    %v992 = vpack.c.b16 %v934, %v932
    %v993 = vpack.c.b16 %v935, %v933
    %v994 = vpack.c.b16 %v938, %v936
    %v995 = vpack.c.b16 %v939, %v937
    %v996 = vpack.c.b16 %v942, %v940
    %v997 = vpack.c.b16 %v943, %v941
    %v998 = vpack.c.b16 %v946, %v944
    %v999 = vpack.c.b16 %v947, %v945
    %v1000 = vpack.c.b16 %v950, %v948
    %v1001 = vpack.c.b16 %v951, %v949
    %v1002 = vpack.c.b16 %v954, %v952
    %v1003 = vpack.c.b16 %v955, %v953
    %v1004 = vpack.c.b16 %v958, %v956
    %v1005 = vpack.c.b16 %v959, %v957
    %v1006 = vpack.c.b16 %v962, %v960
    %v1007 = vpack.c.b16 %v963, %v961
    %v1008 = vpack.c.b16 %v966, %v964
    %v1009 = vpack.c.b16 %v967, %v965
    %v1010 = vpack.c.b16 %v970, %v968
    %v1011 = vpack.c.b16 %v971, %v969
    %v1012 = vpack.c.b16 %v974, %v972
    %v1013 = vpack.c.b16 %v975, %v973
    %v1014 = vpack.c.b16 %v978, %v976
    %v1015 = vpack.c.b16 %v979, %v977
    %v1016 = vpack.c.b16 %v982, %v980
    %v1017 = vpack.c.b16 %v983, %v981
    %v1018 = vpack.c.b16 %v986, %v984
    %v1019 = vpack.c.b16 %v987, %v985
    %1052 = vmatprep.subr.bf16.mxu0 %v989
    %1053 = vmatpush1.bf16.msra.mxu0 %v988
    %1054 = vmatprep.subr.bf16.mxu0 %v991
    %1055 = vmatpush1.bf16.msra.mxu0 %v990
    %1056 = vmatprep.subr.bf16.mxu0 %v993
    %1057 = vmatpush1.bf16.msra.mxu0 %v992
    %1058 = vmatprep.subr.bf16.mxu0 %v995
    %1059 = vmatpush1.bf16.msra.mxu0 %v994
    %1060 = vmatprep.subr.bf16.mxu0 %v997
    %1061 = vmatpush1.bf16.msra.mxu0 %v996
    %1062 = vmatprep.subr.bf16.mxu0 %v999
    %1063 = vmatpush1.bf16.msra.mxu0 %v998
    %1064 = vmatprep.subr.bf16.mxu0 %v1001
    %1065 = vmatpush1.bf16.msra.mxu0 %v1000
    %1066 = vmatprep.subr.bf16.mxu0 %v1003
    %1067 = vmatpush1.bf16.msra.mxu0 %v1002
    %1068 = vmatprep.subr.bf16.mxu0 %v1005
    %1069 = vmatpush1.bf16.msra.mxu0 %v1004
    %1070 = vmatprep.subr.bf16.mxu0 %v1007
    %1071 = vmatpush1.bf16.msra.mxu0 %v1006
    %1072 = vmatprep.subr.bf16.mxu0 %v1009
    %1073 = vmatpush1.bf16.msra.mxu0 %v1008
    %1074 = vmatprep.subr.bf16.mxu0 %v1011
    %1075 = vmatpush1.bf16.msra.mxu0 %v1010
    %1076 = vmatprep.subr.bf16.mxu0 %v1013
    %1077 = vmatpush1.bf16.msra.mxu0 %v1012
    %1078 = vmatprep.subr.bf16.mxu0 %v1015
    %1079 = vmatpush1.bf16.msra.mxu0 %v1014
    %1080 = vmatprep.subr.bf16.mxu0 %v1017
    %1081 = vmatpush1.bf16.msra.mxu0 %v1016
    %1082 = vmatprep.subr.bf16.mxu0 %v1019
    %1083 = vmatpush1.bf16.msra.mxu0 %v1018
    %1084 = vmatprep.mubr.bf16.mxu0 %v880
    %1085 = vmatmul.mubr.bf16.gmra.mrb[0].mxu0 %v879
    %v1086 = vpop.f32.mrb[0].mxu0
    %v1087 = vadd.f32 %v885, %v1086
    %v1088 = vpop.f32.mrb[0].mxu0
    %v1089 = vadd.f32 %v889, %v1088
    %v1090 = vpop.f32.mrb[0].mxu0
    %v1091 = vpop.f32.mrb[0].mxu0
    %1092 = vdwg.mxu0
    %v1093 = vmax.f32 %v1087, 0.0
    %v1094 = vmax.f32 %v1089, 0.0
    %v1095 = vpack.c.bf16 %v1093, %v1093
    %v1096 = vpack.c.bf16 %v1094, %v1094
    %v1097 = vlaneseq
    %v1098 = vshrl.u32 %v1097, 7
    %v1099 = vsub.s32 0, %v1098
    %v1100 = vrot.slane %v743, %v1099
    %v1133 = vunpack.c.l.b16 %v707
    %v1134 = vunpack.c.l.b16 %v708
    %v1135 = vunpack.c.l.b16 %v709
    %v1136 = vunpack.c.l.b16 %v710
    %v1137 = vunpack.c.l.b16 %v711
    %v1138 = vunpack.c.l.b16 %v712
    %v1139 = vunpack.c.l.b16 %v713
    %v1140 = vunpack.c.l.b16 %v714
    %v1141 = vunpack.c.l.b16 %v715
    %v1142 = vunpack.c.l.b16 %v716
    %v1143 = vunpack.c.l.b16 %v717
    %v1144 = vunpack.c.l.b16 %v718
    %v1145 = vunpack.c.l.b16 %v719
    %v1146 = vunpack.c.l.b16 %v720
    %v1147 = vunpack.c.l.b16 %v721
    %v1148 = vunpack.c.l.b16 %v722
    %v1149 = vunpack.c.l.b16 %v723
    %v1150 = vunpack.c.l.b16 %v724
    %v1151 = vunpack.c.l.b16 %v725
    %v1152 = vunpack.c.l.b16 %v726
    %v1153 = vunpack.c.l.b16 %v727
    %v1154 = vunpack.c.l.b16 %v728
    %v1155 = vunpack.c.l.b16 %v729
    %v1156 = vunpack.c.l.b16 %v730
    %v1157 = vunpack.c.l.b16 %v731
    %v1158 = vunpack.c.l.b16 %v732
    %v1159 = vunpack.c.l.b16 %v733
    %v1160 = vunpack.c.l.b16 %v734
    %v1161 = vunpack.c.l.b16 %v735
    %v1162 = vunpack.c.l.b16 %v736
    %v1163 = vunpack.c.l.b16 %v737
    %v1164 = vunpack.c.l.b16 %v738
    %v1165 = vpack.c.b16 %v1134, %v1133
    %v1166 = vpack.c.b16 %v1136, %v1135
    %v1167 = vpack.c.b16 %v1138, %v1137
    %v1168 = vpack.c.b16 %v1140, %v1139
    %v1169 = vpack.c.b16 %v1142, %v1141
    %v1170 = vpack.c.b16 %v1144, %v1143
    %v1171 = vpack.c.b16 %v1146, %v1145
    %v1172 = vpack.c.b16 %v1148, %v1147
    %v1173 = vpack.c.b16 %v1150, %v1149
    %v1174 = vpack.c.b16 %v1152, %v1151
    %v1175 = vpack.c.b16 %v1154, %v1153
    %v1176 = vpack.c.b16 %v1156, %v1155
    %v1177 = vpack.c.b16 %v1158, %v1157
    %v1178 = vpack.c.b16 %v1160, %v1159
    %v1179 = vpack.c.b16 %v1162, %v1161
    %v1180 = vpack.c.b16 %v1164, %v1163
    %1197 = vmatprep.subr.bf16.mxu0 0
    %1198 = vmatpush1.bf16.msra.mxu0 %v1165
    %1199 = vmatprep.subr.bf16.mxu0 0
    %1200 = vmatpush1.bf16.msra.mxu0 %v1166
    %1201 = vmatprep.subr.bf16.mxu0 0
    %1202 = vmatpush1.bf16.msra.mxu0 %v1167
    %1203 = vmatprep.subr.bf16.mxu0 0
    %1204 = vmatpush1.bf16.msra.mxu0 %v1168
    %1205 = vmatprep.subr.bf16.mxu0 0
    %1206 = vmatpush1.bf16.msra.mxu0 %v1169
    %1207 = vmatprep.subr.bf16.mxu0 0
    %1208 = vmatpush1.bf16.msra.mxu0 %v1170
    %1209 = vmatprep.subr.bf16.mxu0 0
    %1210 = vmatpush1.bf16.msra.mxu0 %v1171
    %1211 = vmatprep.subr.bf16.mxu0 0
    %1212 = vmatpush1.bf16.msra.mxu0 %v1172
    %1213 = vmatprep.subr.bf16.mxu0 0
    %1214 = vmatpush1.bf16.msra.mxu0 %v1173
    %1215 = vmatprep.subr.bf16.mxu0 0
    %1216 = vmatpush1.bf16.msra.mxu0 %v1174
    %1217 = vmatprep.subr.bf16.mxu0 0
    %1218 = vmatpush1.bf16.msra.mxu0 %v1175
    %1219 = vmatprep.subr.bf16.mxu0 0
    %1220 = vmatpush1.bf16.msra.mxu0 %v1176
    %1221 = vmatprep.subr.bf16.mxu0 0
    %1222 = vmatpush1.bf16.msra.mxu0 %v1177
    %1223 = vmatprep.subr.bf16.mxu0 0
    %1224 = vmatpush1.bf16.msra.mxu0 %v1178
    %1225 = vmatprep.subr.bf16.mxu0 0
    %1226 = vmatpush1.bf16.msra.mxu0 %v1179
    %1227 = vmatprep.subr.bf16.mxu0 0
    %1228 = vmatpush1.bf16.msra.mxu0 %v1180
    %1229 = vmatprep.mubr.bf16.mxu0 %v1096
    %1230 = vmatmul.mubr.bf16.gmra.mrb[0].mxu0 %v1095
    %v1231 = vpop.f32.mrb[0].mxu0
    %v1232 = vadd.f32 %v1100, %v1231
    %v1233 = vpop.f32.mrb[0].mxu0
    %v1234 = vpop.f32.mrb[0].mxu0
    %v1235 = vpop.f32.mrb[0].mxu0
    %1236 = vdwg.mxu0
    %v1237 = vmax.f32 %v1232, 0.0
    %v1238 = vld [vmem:[#allocation5 + $0x100] sm:$0xff]
    %v1239 = vld [vmem:[#allocation5 + $0x108] sm:$0xff]
    %v1240 = vld [vmem:[#allocation5 + $0x110] sm:$0xff]
    %v1241 = vld [vmem:[#allocation5 + $0x118] sm:$0xff]
    %v1242 = vld [vmem:[#allocation5 + $0x120] sm:$0xff]
    %v1243 = vld [vmem:[#allocation5 + $0x128] sm:$0xff]
    %v1244 = vld [vmem:[#allocation5 + $0x130] sm:$0xff]
    %v1245 = vld [vmem:[#allocation5 + $0x138] sm:$0xff]
    %v1246 = vld [vmem:[#allocation5 + $0x140] sm:$0xff]
    %v1247 = vld [vmem:[#allocation5 + $0x148] sm:$0xff]
    %v1248 = vld [vmem:[#allocation5 + $0x150] sm:$0xff]
    %v1249 = vld [vmem:[#allocation5 + $0x158] sm:$0xff]
    %v1250 = vld [vmem:[#allocation5 + $0x160] sm:$0xff]
    %v1251 = vld [vmem:[#allocation5 + $0x168] sm:$0xff]
    %v1252 = vld [vmem:[#allocation5 + $0x170] sm:$0xff]
    %v1253 = vld [vmem:[#allocation5 + $0x178] sm:$0xff]
    %v1254 = vld [vmem:[#allocation7 + $0x200] sm:$0xff]
    %v1255 = vld [vmem:[#allocation7 + $0x208] sm:$0xff]
    %v1256 = vld [vmem:[#allocation7 + $0x210] sm:$0xff]
    %v1257 = vld [vmem:[#allocation7 + $0x218] sm:$0xff]
    %v1258 = vld [vmem:[#allocation7 + $0x220] sm:$0xff]
    %v1259 = vld [vmem:[#allocation7 + $0x228] sm:$0xff]
    %v1260 = vld [vmem:[#allocation7 + $0x230] sm:$0xff]
    %v1261 = vld [vmem:[#allocation7 + $0x238] sm:$0xff]
    %v1262 = vld [vmem:[#allocation7 + $0x240] sm:$0xff]
    %v1263 = vld [vmem:[#allocation7 + $0x248] sm:$0xff]
    %v1264 = vld [vmem:[#allocation7 + $0x250] sm:$0xff]
    %v1265 = vld [vmem:[#allocation7 + $0x258] sm:$0xff]
    %v1266 = vld [vmem:[#allocation7 + $0x260] sm:$0xff]
    %v1267 = vld [vmem:[#allocation7 + $0x268] sm:$0xff]
    %v1268 = vld [vmem:[#allocation7 + $0x270] sm:$0xff]
    %v1269 = vld [vmem:[#allocation7 + $0x278] sm:$0xff]
    %v1270 = vld [vmem:[#allocation7 + $0x280] sm:$0xff]
    %v1271 = vld [vmem:[#allocation7 + $0x288] sm:$0xff]
    %v1272 = vld [vmem:[#allocation7 + $0x290] sm:$0xff]
    %v1273 = vld [vmem:[#allocation7 + $0x298] sm:$0xff]
    %v1274 = vld [vmem:[#allocation7 + $0x2a0] sm:$0xff]
    %v1275 = vld [vmem:[#allocation7 + $0x2a8] sm:$0xff]
    %v1276 = vld [vmem:[#allocation7 + $0x2b0] sm:$0xff]
    %v1277 = vld [vmem:[#allocation7 + $0x2b8] sm:$0xff]
    %v1278 = vld [vmem:[#allocation7 + $0x2c0] sm:$0xff]
    %v1279 = vld [vmem:[#allocation7 + $0x2c8] sm:$0xff]
    %v1280 = vld [vmem:[#allocation7 + $0x2d0] sm:$0xff]
    %v1281 = vld [vmem:[#allocation7 + $0x2d8] sm:$0xff]
    %v1282 = vld [vmem:[#allocation7 + $0x2e0] sm:$0xff]
    %v1283 = vld [vmem:[#allocation7 + $0x2e8] sm:$0xff]
    %v1284 = vld [vmem:[#allocation7 + $0x2f0] sm:$0xff]
    %v1285 = vld [vmem:[#allocation7 + $0x2f8] sm:$0xff]
    %v1286 = vld [vmem:[#allocation8 + $0x100] sm:$0xf]
    %v1287 = vld [vmem:[#allocation8 + $0x104] sm:$0xf]
    %v1288 = vld [vmem:[#allocation8 + $0x108] sm:$0xf]
    %v1289 = vld [vmem:[#allocation8 + $0x10c] sm:$0xf]
    %v1290 = vld [vmem:[#allocation8 + $0x110] sm:$0xf]
    %v1291 = vld [vmem:[#allocation8 + $0x114] sm:$0xf]
    %v1292 = vld [vmem:[#allocation8 + $0x118] sm:$0xf]
    %v1293 = vld [vmem:[#allocation8 + $0x11c] sm:$0xf]
    %v1294 = vld [vmem:[#allocation8 + $0x120] sm:$0xf]
    %v1295 = vld [vmem:[#allocation8 + $0x124] sm:$0xf]
    %v1296 = vld [vmem:[#allocation8 + $0x128] sm:$0xf]
    %v1297 = vld [vmem:[#allocation8 + $0x12c] sm:$0xf]
    %v1298 = vld [vmem:[#allocation8 + $0x130] sm:$0xf]
    %v1299 = vld [vmem:[#allocation8 + $0x134] sm:$0xf]
    %v1300 = vld [vmem:[#allocation8 + $0x138] sm:$0xf]
    %v1301 = vld [vmem:[#allocation8 + $0x13c] sm:$0xf]
    %v1302 = vld [vmem:[#allocation8 + $0x140] sm:$0xf]
    %v1303 = vld [vmem:[#allocation8 + $0x144] sm:$0xf]
    %v1304 = vld [vmem:[#allocation8 + $0x148] sm:$0xf]
    %v1305 = vld [vmem:[#allocation8 + $0x14c] sm:$0xf]
    %v1306 = vld [vmem:[#allocation8 + $0x150] sm:$0xf]
    %v1307 = vld [vmem:[#allocation8 + $0x154] sm:$0xf]
    %v1308 = vld [vmem:[#allocation8 + $0x158] sm:$0xf]
    %v1309 = vld [vmem:[#allocation8 + $0x15c] sm:$0xf]
    %v1310 = vld [vmem:[#allocation8 + $0x160] sm:$0xf]
    %v1311 = vld [vmem:[#allocation8 + $0x164] sm:$0xf]
    %v1312 = vld [vmem:[#allocation8 + $0x168] sm:$0xf]
    %v1313 = vld [vmem:[#allocation8 + $0x16c] sm:$0xf]
    %v1314 = vld [vmem:[#allocation8 + $0x170] sm:$0xf]
    %v1315 = vld [vmem:[#allocation8 + $0x174] sm:$0xf]
    %v1316 = vld [vmem:[#allocation8 + $0x178] sm:$0xf]
    %v1317 = vld [vmem:[#allocation8 + $0x17c] sm:$0xf]
    %s1318 = scalar_lea.vmem %s4, 2
    %v1319 = vld [vmem:[%s1318] ss:$4 sm:$0x3]
    %s1320 = scalar_lea.vmem %s5, 2
    %v1321 = vld [vmem:[%s1320] ss:$4 sm:$0x3]
    %v1322 = vld [vmem:[%s6 + $0x2] sm:$0x1]
    %v1323 = vpack.c.bf16 %v1237, %v1237
    %v1325 = vlaneseq
    %v1326 = vshrl.u32 %v1325, 7
    %v1327 = vsub.s32 0, %v1326
    %v1328 = vrot.slane %v1319, %v1327
    %v1329 = vlaneseq
    %v1330 = vshrl.u32 %v1329, 7
    %v1331 = vsub.s32 1, %v1330
    %v1332 = vrot.slane %v1319, %v1331
    %v1351 = vunpack.c.l.b16 %v1238
    %v1352 = vunpack.c.h.b16 %v1238
    %v1353 = vunpack.c.l.b16 %v1239
    %v1354 = vunpack.c.h.b16 %v1239
    %v1355 = vunpack.c.l.b16 %v1240
    %v1356 = vunpack.c.h.b16 %v1240
    %v1357 = vunpack.c.l.b16 %v1241
    %v1358 = vunpack.c.h.b16 %v1241
    %v1359 = vunpack.c.l.b16 %v1242
    %v1360 = vunpack.c.h.b16 %v1242
    %v1361 = vunpack.c.l.b16 %v1243
    %v1362 = vunpack.c.h.b16 %v1243
    %v1363 = vunpack.c.l.b16 %v1244
    %v1364 = vunpack.c.h.b16 %v1244
    %v1365 = vunpack.c.l.b16 %v1245
    %v1366 = vunpack.c.h.b16 %v1245
    %v1367 = vunpack.c.l.b16 %v1246
    %v1368 = vunpack.c.h.b16 %v1246
    %v1369 = vunpack.c.l.b16 %v1247
    %v1370 = vunpack.c.h.b16 %v1247
    %v1371 = vunpack.c.l.b16 %v1248
    %v1372 = vunpack.c.h.b16 %v1248
    %v1373 = vunpack.c.l.b16 %v1249
    %v1374 = vunpack.c.h.b16 %v1249
    %v1375 = vunpack.c.l.b16 %v1250
    %v1376 = vunpack.c.h.b16 %v1250
    %v1377 = vunpack.c.l.b16 %v1251
    %v1378 = vunpack.c.h.b16 %v1251
    %v1379 = vunpack.c.l.b16 %v1252
    %v1380 = vunpack.c.h.b16 %v1252
    %v1381 = vunpack.c.l.b16 %v1253
    %v1382 = vunpack.c.h.b16 %v1253
    %v1383 = vpack.c.b16 %v1353, %v1351
    %v1384 = vpack.c.b16 %v1354, %v1352
    %v1385 = vpack.c.b16 %v1357, %v1355
    %v1386 = vpack.c.b16 %v1358, %v1356
    %v1387 = vpack.c.b16 %v1361, %v1359
    %v1388 = vpack.c.b16 %v1362, %v1360
    %v1389 = vpack.c.b16 %v1365, %v1363
    %v1390 = vpack.c.b16 %v1366, %v1364
    %v1391 = vpack.c.b16 %v1369, %v1367
    %v1392 = vpack.c.b16 %v1370, %v1368
    %v1393 = vpack.c.b16 %v1373, %v1371
    %v1394 = vpack.c.b16 %v1374, %v1372
    %v1395 = vpack.c.b16 %v1377, %v1375
    %v1396 = vpack.c.b16 %v1378, %v1376
    %v1397 = vpack.c.b16 %v1381, %v1379
    %v1398 = vpack.c.b16 %v1382, %v1380
    %1415 = vmatprep.subr.bf16.mxu0 %v1384
    %1416 = vmatpush1.bf16.msra.mxu0 %v1383
    %1417 = vmatprep.subr.bf16.mxu0 %v1386
    %1418 = vmatpush1.bf16.msra.mxu0 %v1385
    %1419 = vmatprep.subr.bf16.mxu0 %v1388
    %1420 = vmatpush1.bf16.msra.mxu0 %v1387
    %1421 = vmatprep.subr.bf16.mxu0 %v1390
    %1422 = vmatpush1.bf16.msra.mxu0 %v1389
    %1423 = vmatprep.subr.bf16.mxu0 %v1392
    %1424 = vmatpush1.bf16.msra.mxu0 %v1391
    %1425 = vmatprep.subr.bf16.mxu0 %v1394
    %1426 = vmatpush1.bf16.msra.mxu0 %v1393
    %1427 = vmatprep.subr.bf16.mxu0 %v1396
    %1428 = vmatpush1.bf16.msra.mxu0 %v1395
    %1429 = vmatprep.subr.bf16.mxu0 %v1398
    %1430 = vmatpush1.bf16.msra.mxu0 %v1397
    %1431 = vmatprep.subr.bf16.mxu0 0
    %1432 = vmatpush1.bf16.msra.mxu0 0
    %1433 = vmatprep.subr.bf16.mxu0 0
    %1434 = vmatpush1.bf16.msra.mxu0 0
    %1435 = vmatprep.subr.bf16.mxu0 0
    %1436 = vmatpush1.bf16.msra.mxu0 0
    %1437 = vmatprep.subr.bf16.mxu0 0
    %1438 = vmatpush1.bf16.msra.mxu0 0
    %1439 = vmatprep.subr.bf16.mxu0 0
    %1440 = vmatpush1.bf16.msra.mxu0 0
    %1441 = vmatprep.subr.bf16.mxu0 0
    %1442 = vmatpush1.bf16.msra.mxu0 0
    %1443 = vmatprep.subr.bf16.mxu0 0
    %1444 = vmatpush1.bf16.msra.mxu0 0
    %1445 = vmatprep.subr.bf16.mxu0 0
    %1446 = vmatpush1.bf16.msra.mxu0 0
    %1447 = vmatprep.mubr.bf16.mxu0 0
    %1448 = vmatmul.mubr.bf16.gmra.mrb[0].mxu0 %v1323
    %v1449 = vpop.f32.mrb[0].mxu0
    %v1450 = vadd.f32 %v1328, %v1449
    %v1451 = vpop.f32.mrb[0].mxu0
    %v1452 = vadd.f32 %v1332, %v1451
    %v1453 = vpop.f32.mrb[0].mxu0
    %v1454 = vpop.f32.mrb[0].mxu0
    %1455 = vdwg.mxu0
    %v1456 = vmax.f32 %v1450, 0.0
    %v1457 = vmax.f32 %v1452, 0.0
    %v1458 = vpack.c.bf16 %v1456, %v1456
    %v1459 = vpack.c.bf16 %v1457, %v1457
    %v1461 = vlaneseq
    %v1462 = vshrl.u32 %v1461, 7
    %v1463 = vsub.s32 0, %v1462
    %v1464 = vrot.slane %v1321, %v1463
    %v1465 = vlaneseq
    %v1466 = vshrl.u32 %v1465, 7
    %v1467 = vsub.s32 1, %v1466
    %v1468 = vrot.slane %v1321, %v1467
    %v1503 = vunpack.c.l.b16 %v1254
    %v1504 = vunpack.c.h.b16 %v1254
    %v1505 = vunpack.c.l.b16 %v1255
    %v1506 = vunpack.c.h.b16 %v1255
    %v1507 = vunpack.c.l.b16 %v1256
    %v1508 = vunpack.c.h.b16 %v1256
    %v1509 = vunpack.c.l.b16 %v1257
    %v1510 = vunpack.c.h.b16 %v1257
    %v1511 = vunpack.c.l.b16 %v1258
    %v1512 = vunpack.c.h.b16 %v1258
    %v1513 = vunpack.c.l.b16 %v1259
    %v1514 = vunpack.c.h.b16 %v1259
    %v1515 = vunpack.c.l.b16 %v1260
    %v1516 = vunpack.c.h.b16 %v1260
    %v1517 = vunpack.c.l.b16 %v1261
    %v1518 = vunpack.c.h.b16 %v1261
    %v1519 = vunpack.c.l.b16 %v1262
    %v1520 = vunpack.c.h.b16 %v1262
    %v1521 = vunpack.c.l.b16 %v1263
    %v1522 = vunpack.c.h.b16 %v1263
    %v1523 = vunpack.c.l.b16 %v1264
    %v1524 = vunpack.c.h.b16 %v1264
    %v1525 = vunpack.c.l.b16 %v1265
    %v1526 = vunpack.c.h.b16 %v1265
    %v1527 = vunpack.c.l.b16 %v1266
    %v1528 = vunpack.c.h.b16 %v1266
    %v1529 = vunpack.c.l.b16 %v1267
    %v1530 = vunpack.c.h.b16 %v1267
    %v1531 = vunpack.c.l.b16 %v1268
    %v1532 = vunpack.c.h.b16 %v1268
    %v1533 = vunpack.c.l.b16 %v1269
    %v1534 = vunpack.c.h.b16 %v1269
    %v1535 = vunpack.c.l.b16 %v1270
    %v1536 = vunpack.c.h.b16 %v1270
    %v1537 = vunpack.c.l.b16 %v1271
    %v1538 = vunpack.c.h.b16 %v1271
    %v1539 = vunpack.c.l.b16 %v1272
    %v1540 = vunpack.c.h.b16 %v1272
    %v1541 = vunpack.c.l.b16 %v1273
    %v1542 = vunpack.c.h.b16 %v1273
    %v1543 = vunpack.c.l.b16 %v1274
    %v1544 = vunpack.c.h.b16 %v1274
    %v1545 = vunpack.c.l.b16 %v1275
    %v1546 = vunpack.c.h.b16 %v1275
    %v1547 = vunpack.c.l.b16 %v1276
    %v1548 = vunpack.c.h.b16 %v1276
    %v1549 = vunpack.c.l.b16 %v1277
    %v1550 = vunpack.c.h.b16 %v1277
    %v1551 = vunpack.c.l.b16 %v1278
    %v1552 = vunpack.c.h.b16 %v1278
    %v1553 = vunpack.c.l.b16 %v1279
    %v1554 = vunpack.c.h.b16 %v1279
    %v1555 = vunpack.c.l.b16 %v1280
    %v1556 = vunpack.c.h.b16 %v1280
    %v1557 = vunpack.c.l.b16 %v1281
    %v1558 = vunpack.c.h.b16 %v1281
    %v1559 = vunpack.c.l.b16 %v1282
    %v1560 = vunpack.c.h.b16 %v1282
    %v1561 = vunpack.c.l.b16 %v1283
    %v1562 = vunpack.c.h.b16 %v1283
    %v1563 = vunpack.c.l.b16 %v1284
    %v1564 = vunpack.c.h.b16 %v1284
    %v1565 = vunpack.c.l.b16 %v1285
    %v1566 = vunpack.c.h.b16 %v1285
    %v1567 = vpack.c.b16 %v1505, %v1503
    %v1568 = vpack.c.b16 %v1506, %v1504
    %v1569 = vpack.c.b16 %v1509, %v1507
    %v1570 = vpack.c.b16 %v1510, %v1508
    %v1571 = vpack.c.b16 %v1513, %v1511
    %v1572 = vpack.c.b16 %v1514, %v1512
    %v1573 = vpack.c.b16 %v1517, %v1515
    %v1574 = vpack.c.b16 %v1518, %v1516
    %v1575 = vpack.c.b16 %v1521, %v1519
    %v1576 = vpack.c.b16 %v1522, %v1520
    %v1577 = vpack.c.b16 %v1525, %v1523
    %v1578 = vpack.c.b16 %v1526, %v1524
    %v1579 = vpack.c.b16 %v1529, %v1527
    %v1580 = vpack.c.b16 %v1530, %v1528
    %v1581 = vpack.c.b16 %v1533, %v1531
    %v1582 = vpack.c.b16 %v1534, %v1532
    %v1583 = vpack.c.b16 %v1537, %v1535
    %v1584 = vpack.c.b16 %v1538, %v1536
    %v1585 = vpack.c.b16 %v1541, %v1539
    %v1586 = vpack.c.b16 %v1542, %v1540
    %v1587 = vpack.c.b16 %v1545, %v1543
    %v1588 = vpack.c.b16 %v1546, %v1544
    %v1589 = vpack.c.b16 %v1549, %v1547
    %v1590 = vpack.c.b16 %v1550, %v1548
    %v1591 = vpack.c.b16 %v1553, %v1551
    %v1592 = vpack.c.b16 %v1554, %v1552
    %v1593 = vpack.c.b16 %v1557, %v1555
    %v1594 = vpack.c.b16 %v1558, %v1556
    %v1595 = vpack.c.b16 %v1561, %v1559
    %v1596 = vpack.c.b16 %v1562, %v1560
    %v1597 = vpack.c.b16 %v1565, %v1563
    %v1598 = vpack.c.b16 %v1566, %v1564
    %1631 = vmatprep.subr.bf16.mxu0 %v1568
    %1632 = vmatpush1.bf16.msra.mxu0 %v1567
    %1633 = vmatprep.subr.bf16.mxu0 %v1570
    %1634 = vmatpush1.bf16.msra.mxu0 %v1569
    %1635 = vmatprep.subr.bf16.mxu0 %v1572
    %1636 = vmatpush1.bf16.msra.mxu0 %v1571
    %1637 = vmatprep.subr.bf16.mxu0 %v1574
    %1638 = vmatpush1.bf16.msra.mxu0 %v1573
    %1639 = vmatprep.subr.bf16.mxu0 %v1576
    %1640 = vmatpush1.bf16.msra.mxu0 %v1575
    %1641 = vmatprep.subr.bf16.mxu0 %v1578
    %1642 = vmatpush1.bf16.msra.mxu0 %v1577
    %1643 = vmatprep.subr.bf16.mxu0 %v1580
    %1644 = vmatpush1.bf16.msra.mxu0 %v1579
    %1645 = vmatprep.subr.bf16.mxu0 %v1582
    %1646 = vmatpush1.bf16.msra.mxu0 %v1581
    %1647 = vmatprep.subr.bf16.mxu0 %v1584
    %1648 = vmatpush1.bf16.msra.mxu0 %v1583
    %1649 = vmatprep.subr.bf16.mxu0 %v1586
    %1650 = vmatpush1.bf16.msra.mxu0 %v1585
    %1651 = vmatprep.subr.bf16.mxu0 %v1588
    %1652 = vmatpush1.bf16.msra.mxu0 %v1587
    %1653 = vmatprep.subr.bf16.mxu0 %v1590
    %1654 = vmatpush1.bf16.msra.mxu0 %v1589
    %1655 = vmatprep.subr.bf16.mxu0 %v1592
    %1656 = vmatpush1.bf16.msra.mxu0 %v1591
    %1657 = vmatprep.subr.bf16.mxu0 %v1594
    %1658 = vmatpush1.bf16.msra.mxu0 %v1593
    %1659 = vmatprep.subr.bf16.mxu0 %v1596
    %1660 = vmatpush1.bf16.msra.mxu0 %v1595
    %1661 = vmatprep.subr.bf16.mxu0 %v1598
    %1662 = vmatpush1.bf16.msra.mxu0 %v1597
    %1663 = vmatprep.mubr.bf16.mxu0 %v1459
    %1664 = vmatmul.mubr.bf16.gmra.mrb[0].mxu0 %v1458
    %v1665 = vpop.f32.mrb[0].mxu0
    %v1666 = vadd.f32 %v1464, %v1665
    %v1667 = vpop.f32.mrb[0].mxu0
    %v1668 = vadd.f32 %v1468, %v1667
    %v1669 = vpop.f32.mrb[0].mxu0
    %v1670 = vpop.f32.mrb[0].mxu0
    %1671 = vdwg.mxu0
    %v1672 = vmax.f32 %v1666, 0.0
    %v1673 = vmax.f32 %v1668, 0.0
    %v1674 = vpack.c.bf16 %v1672, %v1672
    %v1675 = vpack.c.bf16 %v1673, %v1673
    %v1676 = vlaneseq
    %v1677 = vshrl.u32 %v1676, 7
    %v1678 = vsub.s32 0, %v1677
    %v1679 = vrot.slane %v1322, %v1678
    %v1712 = vunpack.c.l.b16 %v1286
    %v1713 = vunpack.c.l.b16 %v1287
    %v1714 = vunpack.c.l.b16 %v1288
    %v1715 = vunpack.c.l.b16 %v1289
    %v1716 = vunpack.c.l.b16 %v1290
    %v1717 = vunpack.c.l.b16 %v1291
    %v1718 = vunpack.c.l.b16 %v1292
    %v1719 = vunpack.c.l.b16 %v1293
    %v1720 = vunpack.c.l.b16 %v1294
    %v1721 = vunpack.c.l.b16 %v1295
    %v1722 = vunpack.c.l.b16 %v1296
    %v1723 = vunpack.c.l.b16 %v1297
    %v1724 = vunpack.c.l.b16 %v1298
    %v1725 = vunpack.c.l.b16 %v1299
    %v1726 = vunpack.c.l.b16 %v1300
    %v1727 = vunpack.c.l.b16 %v1301
    %v1728 = vunpack.c.l.b16 %v1302
    %v1729 = vunpack.c.l.b16 %v1303
    %v1730 = vunpack.c.l.b16 %v1304
    %v1731 = vunpack.c.l.b16 %v1305
    %v1732 = vunpack.c.l.b16 %v1306
    %v1733 = vunpack.c.l.b16 %v1307
    %v1734 = vunpack.c.l.b16 %v1308
    %v1735 = vunpack.c.l.b16 %v1309
    %v1736 = vunpack.c.l.b16 %v1310
    %v1737 = vunpack.c.l.b16 %v1311
    %v1738 = vunpack.c.l.b16 %v1312
    %v1739 = vunpack.c.l.b16 %v1313
    %v1740 = vunpack.c.l.b16 %v1314
    %v1741 = vunpack.c.l.b16 %v1315
    %v1742 = vunpack.c.l.b16 %v1316
    %v1743 = vunpack.c.l.b16 %v1317
    %v1744 = vpack.c.b16 %v1713, %v1712
    %v1745 = vpack.c.b16 %v1715, %v1714
    %v1746 = vpack.c.b16 %v1717, %v1716
    %v1747 = vpack.c.b16 %v1719, %v1718
    %v1748 = vpack.c.b16 %v1721, %v1720
    %v1749 = vpack.c.b16 %v1723, %v1722
    %v1750 = vpack.c.b16 %v1725, %v1724
    %v1751 = vpack.c.b16 %v1727, %v1726
    %v1752 = vpack.c.b16 %v1729, %v1728
    %v1753 = vpack.c.b16 %v1731, %v1730
    %v1754 = vpack.c.b16 %v1733, %v1732
    %v1755 = vpack.c.b16 %v1735, %v1734
    %v1756 = vpack.c.b16 %v1737, %v1736
    %v1757 = vpack.c.b16 %v1739, %v1738
    %v1758 = vpack.c.b16 %v1741, %v1740
    %v1759 = vpack.c.b16 %v1743, %v1742
    %1776 = vmatprep.subr.bf16.mxu0 0
    %1777 = vmatpush1.bf16.msra.mxu0 %v1744
    %1778 = vmatprep.subr.bf16.mxu0 0
    %1779 = vmatpush1.bf16.msra.mxu0 %v1745
    %1780 = vmatprep.subr.bf16.mxu0 0
    %1781 = vmatpush1.bf16.msra.mxu0 %v1746
    %1782 = vmatprep.subr.bf16.mxu0 0
    %1783 = vmatpush1.bf16.msra.mxu0 %v1747
    %1784 = vmatprep.subr.bf16.mxu0 0
    %1785 = vmatpush1.bf16.msra.mxu0 %v1748
    %1786 = vmatprep.subr.bf16.mxu0 0
    %1787 = vmatpush1.bf16.msra.mxu0 %v1749
    %1788 = vmatprep.subr.bf16.mxu0 0
    %1789 = vmatpush1.bf16.msra.mxu0 %v1750
    %1790 = vmatprep.subr.bf16.mxu0 0
    %1791 = vmatpush1.bf16.msra.mxu0 %v1751
    %1792 = vmatprep.subr.bf16.mxu0 0
    %1793 = vmatpush1.bf16.msra.mxu0 %v1752
    %1794 = vmatprep.subr.bf16.mxu0 0
    %1795 = vmatpush1.bf16.msra.mxu0 %v1753
    %1796 = vmatprep.subr.bf16.mxu0 0
    %1797 = vmatpush1.bf16.msra.mxu0 %v1754
    %1798 = vmatprep.subr.bf16.mxu0 0
    %1799 = vmatpush1.bf16.msra.mxu0 %v1755
    %1800 = vmatprep.subr.bf16.mxu0 0
    %1801 = vmatpush1.bf16.msra.mxu0 %v1756
    %1802 = vmatprep.subr.bf16.mxu0 0
    %1803 = vmatpush1.bf16.msra.mxu0 %v1757
    %1804 = vmatprep.subr.bf16.mxu0 0
    %1805 = vmatpush1.bf16.msra.mxu0 %v1758
    %1806 = vmatprep.subr.bf16.mxu0 0
    %1807 = vmatpush1.bf16.msra.mxu0 %v1759
    %1808 = vmatprep.mubr.bf16.mxu0 %v1675
    %1809 = vmatmul.mubr.bf16.gmra.mrb[0].mxu0 %v1674
    %v1810 = vpop.f32.mrb[0].mxu0
    %v1811 = vadd.f32 %v1679, %v1810
    %v1812 = vpop.f32.mrb[0].mxu0
    %v1813 = vpop.f32.mrb[0].mxu0
    %v1814 = vpop.f32.mrb[0].mxu0
    %1815 = vdwg.mxu0
    %v1816 = vmax.f32 %v1811, 0.0
    %1817 = vst [vmem:[#allocation10] sm:$0xff] %v1816
    // Predicated region
    $region46: #{tpu_custom_call.1} parent=1 // pred_check
      _
    $region47: #{tpu_custom_call.1} parent=1 // pred_check_branch
      %1819 = sbr.rel (0) target = $region49
    $region48: #{tpu_custom_call.1} parent=1 // pred_region
      %s1821 = ssub.s32 128, 128
      %1822 = vsyncadd [#allocation4], %s1821
      %s1824 = sshll.u32 [#allocation10], 4
      %s1825 = int_to_ptr.vmem [resolvable:$true] %s1824
      %1827 = dma.vmem_to_hbm [thread:$0]  %s1825, 128, %s7, [#allocation4]
    $region49: #{tpu_custom_call.1} parent=1 // pred_fallthru
      _
    // Predicated region
    $region50: #{tpu_custom_call.1} parent=1 // pred_check
      _
    $region51: #{tpu_custom_call.1} parent=1 // pred_check_branch
      %1829 = sbr.rel (0) target = $region53
    $region52: #{tpu_custom_call.1} parent=1 // pred_region
      %1830 = dma.done [#allocation4], 128
    $region53: #{tpu_custom_call.1} parent=1 // pred_fallthru
      _
    %1831 = vsyncpa [#allocation3], 1
    %1832 = vsyncpa [#allocation6], 1
    %1833 = vsyncpa [#allocation9], 1
    %1834 = vsyncpa [#allocation4], 1

</llo_original>
